<compile_context>
chip_gen: v5e
topology: v5e:2x2
jax: 0.10.0
libtpu: 0.0.40
codegen_flags: <defaults>
</compile_context>

<pallas_src>
import functools

import jax
import jax.numpy as jnp
from jax.experimental import pallas as pl
from jax.experimental.pallas import tpu as pltpu

EPS = 1e-6
NEG_SLOPE = 0.2
LANE = 128


def _rup(c, m=LANE):
    return ((c + m - 1) // m) * m


# --------------------------- in-kernel helpers -------------------------------

def _vn_lrelu_2d(x2d, wf, wd, tn):
    """Vector-neuron Linear + LeakyReLU, V=3 folded into the row dim.

    x2d: (3*tn, Cin) -- the three vector components stacked along rows.
    wf / wd: (Cin, Cout) feature / direction weights (zero-padded).
    Returns (3*tn, Cout).
    """
    p = jnp.dot(x2d, wf, preferred_element_type=jnp.float32)
    d = jnp.dot(x2d, wd, preferred_element_type=jnp.float32)
    p0, p1, p2 = p[:tn], p[tn:2 * tn], p[2 * tn:]
    d0, d1, d2 = d[:tn], d[tn:2 * tn], d[2 * tn:]
    dot = p0 * d0 + p1 * d1 + p2 * d2          # <p, d> over the 3 components
    dns = d0 * d0 + d1 * d1 + d2 * d2          # |d|^2
    inv = pl.reciprocal(dns + EPS, approx=True)          # EUP slot (~free)
    s = (1.0 - NEG_SLOPE) * jnp.where(dot < 0.0, dot * inv, 0.0)
    return jnp.concatenate([p0 - s * d0, p1 - s * d1, p2 - s * d2], axis=0)


def _vn_lrelu_3d(x, wf, wd):
    """Same math on the tiny pooled tensor. x: (B, 3, Cin) -> (B, 3, Cout)."""
    p = jnp.einsum("bvc,co->bvo", x, wf, preferred_element_type=jnp.float32)
    d = jnp.einsum("bvc,co->bvo", x, wd, preferred_element_type=jnp.float32)
    dot = jnp.sum(p * d, axis=1, keepdims=True)
    dns = jnp.sum(d * d, axis=1, keepdims=True)
    inv = pl.reciprocal(dns + EPS, approx=True)
    s = (1.0 - NEG_SLOPE) * jnp.where(dot < 0.0, dot * inv, 0.0)
    return p - s * d


# -------------------------------- kernels ------------------------------------

def _fused_conv_mean_kernel(x_ref, wf1_ref, wd1_ref, wf2_ref, wd2_ref,
                            wf3_ref, wd3_ref, o_ref, *, tn, inv_n):
    # x_ref : (3, TN, C0)  one point-tile of one batch element
    # o_ref : (3, C3P)     running mean over N for that batch element
    nt = pl.program_id(1)

    @pl.when(nt == 0)
    def _init():
        o_ref[...] = jnp.zeros_like(o_ref)

    # Fold the 3 vector components into the matmul row dimension (TN % 8 == 0
    # so this sublane concat is layout-aligned).
    x2d = jnp.concatenate([x_ref[0], x_ref[1], x_ref[2]], axis=0)   # (3*TN, C0)

    h = _vn_lrelu_2d(x2d, wf1_ref[...], wd1_ref[...], tn)
    h = _vn_lrelu_2d(h, wf2_ref[...], wd2_ref[...], tn)
    h = _vn_lrelu_2d(h, wf3_ref[...], wd3_ref[...], tn)             # (3*TN, C3P)

    # Partial mean contribution of this point-tile.
    part = jnp.sum(h.reshape(3, tn, h.shape[-1]), axis=1)           # (3, C3P)
    o_ref[...] += part * inv_n


def _fused_fc_kernel(x_ref, wf1_ref, wd1_ref, wf2_ref, wd2_ref, w3_ref, o_ref):
    # Pooled features: only B rows of work -> single un-gridded kernel.
    h = _vn_lrelu_3d(x_ref[...], wf1_ref[...], wd1_ref[...])
    h = _vn_lrelu_3d(h, wf2_ref[...], wd2_ref[...])
    o_ref[...] = jnp.einsum("bvc,co->bvo", h, w3_ref[...],
                            preferred_element_type=jnp.float32)


# ------------------------------- wrappers -------------------------------------

def fused_conv_mean(x_t, wf1, wd1, wf2, wd2, wf3, wd3, *, tn):
    """x_t: (3, B, N, C0) -> pooled (B, 3, C3P) = mean over N of conv3(conv2(conv1(x)))."""
    _, b, n, c0 = x_t.shape
    c3p = wf3.shape[1]
    assert n % tn == 0, (n, tn)

    kern = functools.partial(_fused_conv_mean_kernel, tn=tn, inv_n=1.0 / n)

    def _w_spec(w):
        # Constant block index -> DMA'd once, stays VMEM-resident across the grid.
        return pl.BlockSpec(w.shape, lambda bi, ni: (0, 0))

    return pl.pallas_call(
        kern,
        out_shape=jax.ShapeDtypeStruct((b, 3, c3p), jnp.float32),
        grid=(b, n // tn),
        in_specs=[
            pl.BlockSpec((3, None, tn, c0), lambda bi, ni: (0, bi, ni, 0)),
            _w_spec(wf1), _w_spec(wd1),
            _w_spec(wf2), _w_spec(wd2),
            _w_spec(wf3), _w_spec(wd3),
        ],
        out_specs=pl.BlockSpec((None, 3, c3p), lambda bi, ni: (bi, 0, 0)),
        compiler_params=pltpu.CompilerParams(
            dimension_semantics=("parallel", "arbitrary"),
            vmem_limit_bytes=48 * 1024 * 1024),
    )(x_t, wf1, wd1, wf2, wd2, wf3, wd3)


def fused_fc(pooled, wf1, wd1, wf2, wd2, w3):
    """pooled: (B, 3, C3P) -> (B, 3, d). Tiny, single invocation, full-array refs."""
    b = pooled.shape[0]
    dout = w3.shape[1]
    return pl.pallas_call(
        _fused_fc_kernel,
        out_shape=jax.ShapeDtypeStruct((b, 3, dout), jnp.float32),
    )(pooled, wf1, wd1, wf2, wd2, w3)


# ------------------------------ parameters ------------------------------------

def _init_linear(key, cin, cout):
    # nn.Linear default-style uniform init, stored as (Cin, Cout) = W.T
    bound = 1.0 / (cin ** 0.5)
    return jax.random.uniform(key, (cin, cout), jnp.float32, -bound, bound)


def _pad_w(w, rows, cols):
    # Zero-pad to lane/sublane friendly sizes; zero rows/cols are exact no-ops
    # through the VN linear + direction-projected LeakyReLU.
    return jnp.pad(w, ((0, rows - w.shape[0]), (0, cols - w.shape[1])))


def init_evstnkd_params(key, d=64, feat_dim=3):
    c1, c2 = 64 // 3, 128 // 3
    c3, c4, c5 = 1024 // feat_dim, 512 // feat_dim, 256 // feat_dim
    dims = [
        ("conv1", d,  c1, d,        _rup(c1)),
        ("conv2", c1, c2, _rup(c1), _rup(c2)),
        ("conv3", c2, c3, _rup(c2), _rup(c3)),
        ("fc1",   c3, c4, _rup(c3), _rup(c4)),
        ("fc2",   c4, c5, _rup(c4), _rup(c5)),
    ]
    params = {}
    keys = jax.random.split(key, 2 * len(dims) + 1)
    for i, (name, cin, cout, cinp, coutp) in enumerate(dims):
        wf = _init_linear(keys[2 * i], cin, cout)       # map_to_feat
        wd = _init_linear(keys[2 * i + 1], cin, cout)   # map_to_dir
        params[name + "_f"] = _pad_w(wf, cinp, coutp)
        params[name + "_d"] = _pad_w(wd, cinp, coutp)
    params["fc3"] = _pad_w(_init_linear(keys[-1], c5, d), _rup(c5), d)  # EVNLinear
    return params


# -------------------------------- forward --------------------------------------

def evstnkd_forward(x, params, *, tn=512):
    # x: PyTorch layout [B, C=d, V=3, N]  ->  output [B, d, 3]
    b, c, v, n = x.shape
    tn = min(tn, n)
    # TODO(synk): this layout permute could be folded into the first kernel's
    # index_map to save one HBM pass over the input; kept in XLA for robustness.
    x_t = jnp.transpose(x, (2, 0, 3, 1))                       # (3, B, N, C)
    pooled = fused_conv_mean(
        x_t,
        params["conv1_f"], params["conv1_d"],
        params["conv2_f"], params["conv2_d"],
        params["conv3_f"], params["conv3_d"], tn=tn)           # (B, 3, C3P)
    out = fused_fc(pooled,
                   params["fc1_f"], params["fc1_d"],
                   params["fc2_f"], params["fc2_d"],
                   params["fc3"])                              # (B, 3, d)
    return jnp.transpose(out, (0, 2, 1))                       # (B, d, 3)


if __name__ == "__main__":
    D = 64        # module default d
    FEAT_DIM = 3  # module default feat_dim
    B, N = 2, 16  # small synthetic shapes

    key = jax.random.PRNGKey(0)
    kx, kp = jax.random.split(key)
    x = jax.random.normal(kx, (B, D, 3, N), dtype=jnp.float32)
    params = init_evstnkd_params(kp, d=D, feat_dim=FEAT_DIM)

    fwd = jax.jit(evstnkd_forward)
    out = jax.block_until_ready(fwd(x, params))
    assert out.shape == (B, D, 3), out.shape
    assert bool(jnp.all(jnp.isfinite(out)))
    print("KERNEL_OK")
</pallas_src>

<mosaic_0001>
module attributes {stable_mosaic.version = 11 : i64} {
  func.func @_fused_fc_kernel(%arg0: memref<2x3x384xf32, #tpu.memory_space<vmem>>, %arg1: memref<384x256xf32, #tpu.memory_space<vmem>>, %arg2: memref<384x256xf32, #tpu.memory_space<vmem>>, %arg3: memref<256x128xf32, #tpu.memory_space<vmem>>, %arg4: memref<256x128xf32, #tpu.memory_space<vmem>>, %arg5: memref<128x64xf32, #tpu.memory_space<vmem>>, %arg6: memref<2x3x64xf32, #tpu.memory_space<vmem>>) attributes {dimension_semantics = [], scalar_prefetch = 0 : i64, scratch_operands = 0 : i64, tpu.core_type = #tpu.core_type<tc>} {
    %c0 = arith.constant 0 : index
    %c0_0 = arith.constant 0 : index
    %c0_1 = arith.constant 0 : index
    %0 = vector.load %arg0[%c0, %c0_0, %c0_1] : memref<2x3x384xf32, #tpu.memory_space<vmem>>, vector<2x3x384xf32>
    %c0_2 = arith.constant 0 : index
    %c0_3 = arith.constant 0 : index
    %1 = vector.load %arg1[%c0_2, %c0_3] : memref<384x256xf32, #tpu.memory_space<vmem>>, vector<384x256xf32>
    %c0_4 = arith.constant 0 : index
    %c0_5 = arith.constant 0 : index
    %2 = vector.load %arg2[%c0_4, %c0_5] : memref<384x256xf32, #tpu.memory_space<vmem>>, vector<384x256xf32>
    "tpu.trace_start"() <{level = 10 : i32, message = "bvc,co->bvo"}> : () -> ()
    %cst = arith.constant dense<0.000000e+00> : vector<2x3x256xf32>
    %3 = tpu.matmul %0, %1, %cst {dimension_numbers = #tpu.dot_dimension_numbers<[2], [0], [0, 1], [1], [0, 0, 0, 1, 1, 1], [], []>} : vector<2x3x384xf32>, vector<384x256xf32>, vector<2x3x256xf32> -> vector<2x3x256xf32>
    %cst_6 = arith.constant dense<0.000000e+00> : vector<2x3x256xf32>
    %4 = tpu.matmul %0, %2, %cst_6 {dimension_numbers = #tpu.dot_dimension_numbers<[2], [0], [0, 1], [1], [0, 0, 0, 1, 1, 1], [], []>} : vector<2x3x384xf32>, vector<384x256xf32>, vector<2x3x256xf32> -> vector<2x3x256xf32>
    "tpu.trace_stop"() : () -> ()
    %5 = arith.mulf %3, %4 : vector<2x3x256xf32>
    %cst_7 = arith.constant dense<0.000000e+00> : vector<2x256xf32>
    %6 = vector.multi_reduction <add>, %5, %cst_7 [1] : vector<2x3x256xf32> to vector<2x256xf32>
    %7 = vector.shape_cast %6 : vector<2x256xf32> to vector<2x1x256xf32>
    %8 = arith.mulf %4, %4 : vector<2x3x256xf32>
    %cst_8 = arith.constant dense<0.000000e+00> : vector<2x256xf32>
    %9 = vector.multi_reduction <add>, %8, %cst_8 [1] : vector<2x3x256xf32> to vector<2x256xf32>
    %10 = vector.shape_cast %9 : vector<2x256xf32> to vector<2x1x256xf32>
    %cst_9 = arith.constant 9.99999997E-7 : f32
    %11 = vector.broadcast %cst_9 : f32 to vector<2x1x256xf32>
    %12 = arith.addf %10, %11 : vector<2x1x256xf32>
    %13 = tpu.reciprocal %12 {approx = true} : vector<2x1x256xf32> -> vector<2x1x256xf32>
    %cst_10 = arith.constant 0.000000e+00 : f32
    %14 = vector.broadcast %cst_10 : f32 to vector<2x1x256xf32>
    %15 = arith.cmpf olt, %7, %14 : vector<2x1x256xf32>
    %16 = arith.mulf %7, %13 : vector<2x1x256xf32>
    %cst_11 = arith.constant 0.000000e+00 : f32
    %17 = vector.broadcast %cst_11 : f32 to vector<2x1x256xf32>
    %18 = arith.select %15, %16, %17 : vector<2x1x256xi1>, vector<2x1x256xf32>
    %cst_12 = arith.constant 8.000000e-01 : f32
    %19 = vector.broadcast %cst_12 : f32 to vector<2x1x256xf32>
    %20 = arith.mulf %19, %18 : vector<2x1x256xf32>
    %21 = vector.broadcast %20 : vector<2x1x256xf32> to vector<2x3x256xf32>
    %22 = arith.mulf %21, %4 : vector<2x3x256xf32>
    %23 = arith.subf %3, %22 : vector<2x3x256xf32>
    %c0_13 = arith.constant 0 : index
    %c0_14 = arith.constant 0 : index
    %24 = vector.load %arg3[%c0_13, %c0_14] : memref<256x128xf32, #tpu.memory_space<vmem>>, vector<256x128xf32>
    %c0_15 = arith.constant 0 : index
    %c0_16 = arith.constant 0 : index
    %25 = vector.load %arg4[%c0_15, %c0_16] : memref<256x128xf32, #tpu.memory_space<vmem>>, vector<256x128xf32>
    "tpu.trace_start"() <{level = 10 : i32, message = "bvc,co->bvo"}> : () -> ()
    %cst_17 = arith.constant dense<0.000000e+00> : vector<2x3x128xf32>
    %26 = tpu.matmul %23, %24, %cst_17 {dimension_numbers = #tpu.dot_dimension_numbers<[2], [0], [0, 1], [1], [0, 0, 0, 1, 1, 1], [], []>} : vector<2x3x256xf32>, vector<256x128xf32>, vector<2x3x128xf32> -> vector<2x3x128xf32>
    %cst_18 = arith.constant dense<0.000000e+00> : vector<2x3x128xf32>
    %27 = tpu.matmul %23, %25, %cst_18 {dimension_numbers = #tpu.dot_dimension_numbers<[2], [0], [0, 1], [1], [0, 0, 0, 1, 1, 1], [], []>} : vector<2x3x256xf32>, vector<256x128xf32>, vector<2x3x128xf32> -> vector<2x3x128xf32>
    "tpu.trace_stop"() : () -> ()
    %28 = arith.mulf %26, %27 : vector<2x3x128xf32>
    %cst_19 = arith.constant dense<0.000000e+00> : vector<2x128xf32>
    %29 = vector.multi_reduction <add>, %28, %cst_19 [1] : vector<2x3x128xf32> to vector<2x128xf32>
    %30 = vector.shape_cast %29 : vector<2x128xf32> to vector<2x1x128xf32>
    %31 = arith.mulf %27, %27 : vector<2x3x128xf32>
    %cst_20 = arith.constant dense<0.000000e+00> : vector<2x128xf32>
    %32 = vector.multi_reduction <add>, %31, %cst_20 [1] : vector<2x3x128xf32> to vector<2x128xf32>
    %33 = vector.shape_cast %32 : vector<2x128xf32> to vector<2x1x128xf32>
    %cst_21 = arith.constant 9.99999997E-7 : f32
    %34 = vector.broadcast %cst_21 : f32 to vector<2x1x128xf32>
    %35 = arith.addf %33, %34 : vector<2x1x128xf32>
    %36 = tpu.reciprocal %35 {approx = true} : vector<2x1x128xf32> -> vector<2x1x128xf32>
    %cst_22 = arith.constant 0.000000e+00 : f32
    %37 = vector.broadcast %cst_22 : f32 to vector<2x1x128xf32>
    %38 = arith.cmpf olt, %30, %37 : vector<2x1x128xf32>
    %39 = arith.mulf %30, %36 : vector<2x1x128xf32>
    %cst_23 = arith.constant 0.000000e+00 : f32
    %40 = vector.broadcast %cst_23 : f32 to vector<2x1x128xf32>
    %41 = arith.select %38, %39, %40 : vector<2x1x128xi1>, vector<2x1x128xf32>
    %cst_24 = arith.constant 8.000000e-01 : f32
    %42 = vector.broadcast %cst_24 : f32 to vector<2x1x128xf32>
    %43 = arith.mulf %42, %41 : vector<2x1x128xf32>
    %44 = vector.broadcast %43 : vector<2x1x128xf32> to vector<2x3x128xf32>
    %45 = arith.mulf %44, %27 : vector<2x3x128xf32>
    %46 = arith.subf %26, %45 : vector<2x3x128xf32>
    %c0_25 = arith.constant 0 : index
    %c0_26 = arith.constant 0 : index
    %47 = vector.load %arg5[%c0_25, %c0_26] : memref<128x64xf32, #tpu.memory_space<vmem>>, vector<128x64xf32>
    "tpu.trace_start"() <{level = 10 : i32, message = "bvc,co->bvo"}> : () -> ()
    %cst_27 = arith.constant dense<0.000000e+00> : vector<2x3x64xf32>
    %48 = tpu.matmul %46, %47, %cst_27 {dimension_numbers = #tpu.dot_dimension_numbers<[2], [0], [0, 1], [1], [0, 0, 0, 1, 1, 1], [], []>} : vector<2x3x128xf32>, vector<128x64xf32>, vector<2x3x64xf32> -> vector<2x3x64xf32>
    "tpu.trace_stop"() : () -> ()
    %c0_28 = arith.constant 0 : index
    %c0_29 = arith.constant 0 : index
    %c0_30 = arith.constant 0 : index
    %49 = vector.load %arg6[%c0_28, %c0_29, %c0_30] : memref<2x3x64xf32, #tpu.memory_space<vmem>>, vector<2x3x64xf32>
    tpu.vector_store %arg6[%c0_28, %c0_29, %c0_30], %48 {strides = array<i32>} : memref<2x3x64xf32, #tpu.memory_space<vmem>>, vector<2x3x64xf32>,
    return
  }
}

module attributes {stable_mosaic.version = 11 : i64} {
  func.func @_fused_conv_mean_kernel(%arg0: i32, %arg1: i32, %arg2: memref<3x1x16x64xf32, #tpu.memory_space<vmem>>, %arg3: memref<64x128xf32, #tpu.memory_space<vmem>>, %arg4: memref<64x128xf32, #tpu.memory_space<vmem>>, %arg5: memref<128x128xf32, #tpu.memory_space<vmem>>, %arg6: memref<128x128xf32, #tpu.memory_space<vmem>>, %arg7: memref<128x384xf32, #tpu.memory_space<vmem>>, %arg8: memref<128x384xf32, #tpu.memory_space<vmem>>, %arg9: memref<1x3x384xf32, #tpu.memory_space<vmem>>) attributes {dimension_semantics = [#tpu.dimension_semantics<parallel>, #tpu.dimension_semantics<arbitrary>], iteration_bounds = array<i64: 2, 1>, scalar_prefetch = 0 : i64, scratch_operands = 0 : i64, tpu.core_type = #tpu.core_type<tc>, window_params = [{transform_indices = @transform_0, window_bounds = array<i64: 3, 1, 16, 64>}, {pipeline_mode = #tpu.pipeline_mode<synchronous>, transform_indices = @transform_1, window_bounds = array<i64: 64, 128>}, {pipeline_mode = #tpu.pipeline_mode<synchronous>, transform_indices = @transform_2, window_bounds = array<i64: 64, 128>}, {pipeline_mode = #tpu.pipeline_mode<synchronous>, transform_indices = @transform_3, window_bounds = array<i64: 128, 128>}, {pipeline_mode = #tpu.pipeline_mode<synchronous>, transform_indices = @transform_4, window_bounds = array<i64: 128, 128>}, {pipeline_mode = #tpu.pipeline_mode<synchronous>, transform_indices = @transform_5, window_bounds = array<i64: 128, 384>}, {pipeline_mode = #tpu.pipeline_mode<synchronous>, transform_indices = @transform_6, window_bounds = array<i64: 128, 384>}, {transform_indices = @transform_7, window_bounds = array<i64: 1, 3, 384>}]} {
    %c0_i32 = arith.constant 0 : i32
    %0 = arith.cmpi eq, %arg1, %c0_i32 : i32
    %1 = arith.extui %0 : i1 to i32
    %c0_i32_0 = arith.constant 0 : i32
    %2 = arith.cmpi ne, %1, %c0_i32_0 : i32
    scf.if %2 {
      %cst_47 = arith.constant 0.000000e+00 : f32
      %131 = vector.broadcast %cst_47 : f32 to vector<3x384xf32>
      %c0_48 = arith.constant 0 : index
      %c0_49 = arith.constant 0 : index
      %c0_50 = arith.constant 0 : index
      %132 = vector.load %arg9[%c0_48, %c0_49, %c0_50] : memref<1x3x384xf32, #tpu.memory_space<vmem>>, vector<1x3x384xf32>
      %133 = vector.shape_cast %132 : vector<1x3x384xf32> to vector<3x384xf32>
      %134 = vector.shape_cast %131 : vector<3x384xf32> to vector<1x3x384xf32>
      tpu.vector_store %arg9[%c0_48, %c0_49, %c0_50], %134 {strides = array<i32>} : memref<1x3x384xf32, #tpu.memory_space<vmem>>, vector<1x3x384xf32>,
    } else {
    }
    %c0 = arith.constant 0 : index
    %c0_1 = arith.constant 0 : index
    %c0_2 = arith.constant 0 : index
    %c0_3 = arith.constant 0 : index
    %3 = vector.load %arg2[%c0, %c0_1, %c0_2, %c0_3] : memref<3x1x16x64xf32, #tpu.memory_space<vmem>>, vector<1x1x16x64xf32>
    %4 = vector.shape_cast %3 : vector<1x1x16x64xf32> to vector<16x64xf32>
    %c1 = arith.constant 1 : index
    %c0_4 = arith.constant 0 : index
    %c0_5 = arith.constant 0 : index
    %c0_6 = arith.constant 0 : index
    %5 = vector.load %arg2[%c1, %c0_4, %c0_5, %c0_6] : memref<3x1x16x64xf32, #tpu.memory_space<vmem>>, vector<1x1x16x64xf32>
    %6 = vector.shape_cast %5 : vector<1x1x16x64xf32> to vector<16x64xf32>
    %c2 = arith.constant 2 : index
    %c0_7 = arith.constant 0 : index
    %c0_8 = arith.constant 0 : index
    %c0_9 = arith.constant 0 : index
    %7 = vector.load %arg2[%c2, %c0_7, %c0_8, %c0_9] : memref<3x1x16x64xf32, #tpu.memory_space<vmem>>, vector<1x1x16x64xf32>
    %8 = vector.shape_cast %7 : vector<1x1x16x64xf32> to vector<16x64xf32>
    %9 = tpu.concatenate %4, %6, %8 in 0 : vector<16x64xf32>, vector<16x64xf32>, vector<16x64xf32> -> vector<48x64xf32>
    %c0_10 = arith.constant 0 : index
    %c0_11 = arith.constant 0 : index
    %10 = vector.load %arg3[%c0_10, %c0_11] : memref<64x128xf32, #tpu.memory_space<vmem>>, vector<64x128xf32>
    %c0_12 = arith.constant 0 : index
    %c0_13 = arith.constant 0 : index
    %11 = vector.load %arg4[%c0_12, %c0_13] : memref<64x128xf32, #tpu.memory_space<vmem>>, vector<64x128xf32>
    %cst = arith.constant dense<0.000000e+00> : vector<48x128xf32>
    %12 = tpu.matmul %9, %10, %cst {dimension_numbers = #tpu.dot_dimension_numbers<[1], [0], [0], [1], [0, 0, 1, 1], [], []>} : vector<48x64xf32>, vector<64x128xf32>, vector<48x128xf32> -> vector<48x128xf32>
    %cst_14 = arith.constant dense<0.000000e+00> : vector<48x128xf32>
    %13 = tpu.matmul %9, %11, %cst_14 {dimension_numbers = #tpu.dot_dimension_numbers<[1], [0], [0], [1], [0, 0, 1, 1], [], []>} : vector<48x64xf32>, vector<64x128xf32>, vector<48x128xf32> -> vector<48x128xf32>
    %14 = vector.extract_strided_slice %12 {offsets = [0, 0], sizes = [16, 128], strides = [1, 1]} : vector<48x128xf32> to vector<16x128xf32>
    %15 = vector.extract_strided_slice %12 {offsets = [16, 0], sizes = [16, 128], strides = [1, 1]} : vector<48x128xf32> to vector<16x128xf32>
    %16 = vector.extract_strided_slice %12 {offsets = [32, 0], sizes = [16, 128], strides = [1, 1]} : vector<48x128xf32> to vector<16x128xf32>
    %17 = vector.extract_strided_slice %13 {offsets = [0, 0], sizes = [16, 128], strides = [1, 1]} : vector<48x128xf32> to vector<16x128xf32>
    %18 = vector.extract_strided_slice %13 {offsets = [16, 0], sizes = [16, 128], strides = [1, 1]} : vector<48x128xf32> to vector<16x128xf32>
    %19 = vector.extract_strided_slice %13 {offsets = [32, 0], sizes = [16, 128], strides = [1, 1]} : vector<48x128xf32> to vector<16x128xf32>
    %20 = arith.mulf %14, %17 : vector<16x128xf32>
    %21 = arith.mulf %15, %18 : vector<16x128xf32>
    %22 = arith.addf %20, %21 : vector<16x128xf32>
    %23 = arith.mulf %16, %19 : vector<16x128xf32>
    %24 = arith.addf %22, %23 : vector<16x128xf32>
    %25 = arith.mulf %17, %17 : vector<16x128xf32>
    %26 = arith.mulf %18, %18 : vector<16x128xf32>
    %27 = arith.addf %25, %26 : vector<16x128xf32>
    %28 = arith.mulf %19, %19 : vector<16x128xf32>
    %29 = arith.addf %27, %28 : vector<16x128xf32>
    %cst_15 = arith.constant 9.99999997E-7 : f32
    %30 = vector.broadcast %cst_15 : f32 to vector<16x128xf32>
    %31 = arith.addf %29, %30 : vector<16x128xf32>
    %32 = tpu.reciprocal %31 {approx = true} : vector<16x128xf32> -> vector<16x128xf32>
    %cst_16 = arith.constant 0.000000e+00 : f32
    %33 = vector.broadcast %cst_16 : f32 to vector<16x128xf32>
    %34 = arith.cmpf olt, %24, %33 : vector<16x128xf32>
    %35 = arith.mulf %24, %32 : vector<16x128xf32>
    %cst_17 = arith.constant 0.000000e+00 : f32
    %36 = vector.broadcast %cst_17 : f32 to vector<16x128xf32>
    %37 = arith.select %34, %35, %36 : vector<16x128xi1>, vector<16x128xf32>
    %cst_18 = arith.constant 8.000000e-01 : f32
    %38 = vector.broadcast %cst_18 : f32 to vector<16x128xf32>
    %39 = arith.mulf %38, %37 : vector<16x128xf32>
    %40 = arith.mulf %39, %17 : vector<16x128xf32>
    %41 = arith.subf %14, %40 : vector<16x128xf32>
    %42 = arith.mulf %39, %18 : vector<16x128xf32>
    %43 = arith.subf %15, %42 : vector<16x128xf32>
    %44 = arith.mulf %39, %19 : vector<16x128xf32>
    %45 = arith.subf %16, %44 : vector<16x128xf32>
    %46 = tpu.concatenate %41, %43, %45 in 0 : vector<16x128xf32>, vector<16x128xf32>, vector<16x128xf32> -> vector<48x128xf32>
    %c0_19 = arith.constant 0 : index
    %c0_20 = arith.constant 0 : index
    %47 = vector.load %arg5[%c0_19, %c0_20] : memref<128x128xf32, #tpu.memory_space<vmem>>, vector<128x128xf32>
    %c0_21 = arith.constant 0 : index
    %c0_22 = arith.constant 0 : index
    %48 = vector.load %arg6[%c0_21, %c0_22] : memref<128x128xf32, #tpu.memory_space<vmem>>, vector<128x128xf32>
    %cst_23 = arith.constant dense<0.000000e+00> : vector<48x128xf32>
    %49 = tpu.matmul %46, %47, %cst_23 {dimension_numbers = #tpu.dot_dimension_numbers<[1], [0], [0], [1], [0, 0, 1, 1], [], []>} : vector<48x128xf32>, vector<128x128xf32>, vector<48x128xf32> -> vector<48x128xf32>
    %cst_24 = arith.constant dense<0.000000e+00> : vector<48x128xf32>
    %50 = tpu.matmul %46, %48, %cst_24 {dimension_numbers = #tpu.dot_dimension_numbers<[1], [0], [0], [1], [0, 0, 1, 1], [], []>} : vector<48x128xf32>, vector<128x128xf32>, vector<48x128xf32> -> vector<48x128xf32>
    %51 = vector.extract_strided_slice %49 {offsets = [0, 0], sizes = [16, 128], strides = [1, 1]} : vector<48x128xf32> to vector<16x128xf32>
    %52 = vector.extract_strided_slice %49 {offsets = [16, 0], sizes = [16, 128], strides = [1, 1]} : vector<48x128xf32> to vector<16x128xf32>
    %53 = vector.extract_strided_slice %49 {offsets = [32, 0], sizes = [16, 128], strides = [1, 1]} : vector<48x128xf32> to vector<16x128xf32>
    %54 = vector.extract_strided_slice %50 {offsets = [0, 0], sizes = [16, 128], strides = [1, 1]} : vector<48x128xf32> to vector<16x128xf32>
    %55 = vector.extract_strided_slice %50 {offsets = [16, 0], sizes = [16, 128], strides = [1, 1]} : vector<48x128xf32> to vector<16x128xf32>
    %56 = vector.extract_strided_slice %50 {offsets = [32, 0], sizes = [16, 128], strides = [1, 1]} : vector<48x128xf32> to vector<16x128xf32>
    %57 = arith.mulf %51, %54 : vector<16x128xf32>
    %58 = arith.mulf %52, %55 : vector<16x128xf32>
    %59 = arith.addf %57, %58 : vector<16x128xf32>
    %60 = arith.mulf %53, %56 : vector<16x128xf32>
    %61 = arith.addf %59, %60 : vector<16x128xf32>
    %62 = arith.mulf %54, %54 : vector<16x128xf32>
    %63 = arith.mulf %55, %55 : vector<16x128xf32>
    %64 = arith.addf %62, %63 : vector<16x128xf32>
    %65 = arith.mulf %56, %56 : vector<16x128xf32>
    %66 = arith.addf %64, %65 : vector<16x128xf32>
    %cst_25 = arith.constant 9.99999997E-7 : f32
    %67 = vector.broadcast %cst_25 : f32 to vector<16x128xf32>
    %68 = arith.addf %66, %67 : vector<16x128xf32>
    %69 = tpu.reciprocal %68 {approx = true} : vector<16x128xf32> -> vector<16x128xf32>
    %cst_26 = arith.constant 0.000000e+00 : f32
    %70 = vector.broadcast %cst_26 : f32 to vector<16x128xf32>
    %71 = arith.cmpf olt, %61, %70 : vector<16x128xf32>
    %72 = arith.mulf %61, %69 : vector<16x128xf32>
    %cst_27 = arith.constant 0.000000e+00 : f32
    %73 = vector.broadcast %cst_27 : f32 to vector<16x128xf32>
    %74 = arith.select %71, %72, %73 : vector<16x128xi1>, vector<16x128xf32>
    %cst_28 = arith.constant 8.000000e-01 : f32
    %75 = vector.broadcast %cst_28 : f32 to vector<16x128xf32>
    %76 = arith.mulf %75, %74 : vector<16x128xf32>
    %77 = arith.mulf %76, %54 : vector<16x128xf32>
    %78 = arith.subf %51, %77 : vector<16x128xf32>
    %79 = arith.mulf %76, %55 : vector<16x128xf32>
    %80 = arith.subf %52, %79 : vector<16x128xf32>
    %81 = arith.mulf %76, %56 : vector<16x128xf32>
    %82 = arith.subf %53, %81 : vector<16x128xf32>
    %83 = tpu.concatenate %78, %80, %82 in 0 : vector<16x128xf32>, vector<16x128xf32>, vector<16x128xf32> -> vector<48x128xf32>
    %c0_29 = arith.constant 0 : index
    %c0_30 = arith.constant 0 : index
    %84 = vector.load %arg7[%c0_29, %c0_30] : memref<128x384xf32, #tpu.memory_space<vmem>>, vector<128x384xf32>
    %c0_31 = arith.constant 0 : index
    %c0_32 = arith.constant 0 : index
    %85 = vector.load %arg8[%c0_31, %c0_32] : memref<128x384xf32, #tpu.memory_space<vmem>>, vector<128x384xf32>
    %cst_33 = arith.constant dense<0.000000e+00> : vector<48x384xf32>
    %86 = tpu.matmul %83, %84, %cst_33 {dimension_numbers = #tpu.dot_dimension_numbers<[1], [0], [0], [1], [0, 0, 1, 1], [], []>} : vector<48x128xf32>, vector<128x384xf32>, vector<48x384xf32> -> vector<48x384xf32>
    %cst_34 = arith.constant dense<0.000000e+00> : vector<48x384xf32>
    %87 = tpu.matmul %83, %85, %cst_34 {dimension_numbers = #tpu.dot_dimension_numbers<[1], [0], [0], [1], [0, 0, 1, 1], [], []>} : vector<48x128xf32>, vector<128x384xf32>, vector<48x384xf32> -> vector<48x384xf32>
    %88 = vector.extract_strided_slice %86 {offsets = [0, 0], sizes = [16, 384], strides = [1, 1]} : vector<48x384xf32> to vector<16x384xf32>
    %89 = vector.extract_strided_slice %86 {offsets = [16, 0], sizes = [16, 384], strides = [1, 1]} : vector<48x384xf32> to vector<16x384xf32>
    %90 = vector.extract_strided_slice %86 {offsets = [32, 0], sizes = [16, 384], strides = [1, 1]} : vector<48x384xf32> to vector<16x384xf32>
    %91 = vector.extract_strided_slice %87 {offsets = [0, 0], sizes = [16, 384], strides = [1, 1]} : vector<48x384xf32> to vector<16x384xf32>
    %92 = vector.extract_strided_slice %87 {offsets = [16, 0], sizes = [16, 384], strides = [1, 1]} : vector<48x384xf32> to vector<16x384xf32>
    %93 = vector.extract_strided_slice %87 {offsets = [32, 0], sizes = [16, 384], strides = [1, 1]} : vector<48x384xf32> to vector<16x384xf32>
    %94 = arith.mulf %88, %91 : vector<16x384xf32>
    %95 = arith.mulf %89, %92 : vector<16x384xf32>
    %96 = arith.addf %94, %95 : vector<16x384xf32>
    %97 = arith.mulf %90, %93 : vector<16x384xf32>
    %98 = arith.addf %96, %97 : vector<16x384xf32>
    %99 = arith.mulf %91, %91 : vector<16x384xf32>
    %100 = arith.mulf %92, %92 : vector<16x384xf32>
    %101 = arith.addf %99, %100 : vector<16x384xf32>
    %102 = arith.mulf %93, %93 : vector<16x384xf32>
    %103 = arith.addf %101, %102 : vector<16x384xf32>
    %cst_35 = arith.constant 9.99999997E-7 : f32
    %104 = vector.broadcast %cst_35 : f32 to vector<16x384xf32>
    %105 = arith.addf %103, %104 : vector<16x384xf32>
    %106 = tpu.reciprocal %105 {approx = true} : vector<16x384xf32> -> vector<16x384xf32>
    %cst_36 = arith.constant 0.000000e+00 : f32
    %107 = vector.broadcast %cst_36 : f32 to vector<16x384xf32>
    %108 = arith.cmpf olt, %98, %107 : vector<16x384xf32>
    %109 = arith.mulf %98, %106 : vector<16x384xf32>
    %cst_37 = arith.constant 0.000000e+00 : f32
    %110 = vector.broadcast %cst_37 : f32 to vector<16x384xf32>
    %111 = arith.select %108, %109, %110 : vector<16x384xi1>, vector<16x384xf32>
    %cst_38 = arith.constant 8.000000e-01 : f32
    %112 = vector.broadcast %cst_38 : f32 to vector<16x384xf32>
    %113 = arith.mulf %112, %111 : vector<16x384xf32>
    %114 = arith.mulf %113, %91 : vector<16x384xf32>
    %115 = arith.subf %88, %114 : vector<16x384xf32>
    %116 = arith.mulf %113, %92 : vector<16x384xf32>
    %117 = arith.subf %89, %116 : vector<16x384xf32>
    %118 = arith.mulf %113, %93 : vector<16x384xf32>
    %119 = arith.subf %90, %118 : vector<16x384xf32>
    %120 = tpu.concatenate %115, %117, %119 in 0 : vector<16x384xf32>, vector<16x384xf32>, vector<16x384xf32> -> vector<48x384xf32>
    %121 = vector.shape_cast %120 : vector<48x384xf32> to vector<3x16x384xf32>
    %cst_39 = arith.constant dense<0.000000e+00> : vector<3x384xf32>
    %122 = vector.multi_reduction <add>, %121, %cst_39 [1] : vector<3x16x384xf32> to vector<3x384xf32>
    %c0_40 = arith.constant 0 : index
    %c0_41 = arith.constant 0 : index
    %c0_42 = arith.constant 0 : index
    %123 = vector.load %arg9[%c0_40, %c0_41, %c0_42] : memref<1x3x384xf32, #tpu.memory_space<vmem>>, vector<1x3x384xf32>
    %124 = vector.shape_cast %123 : vector<1x3x384xf32> to vector<3x384xf32>
    %cst_43 = arith.constant 6.250000e-02 : f32
    %125 = vector.broadcast %cst_43 : f32 to vector<3x384xf32>
    %126 = arith.mulf %122, %125 : vector<3x384xf32>
    %127 = arith.addf %124, %126 : vector<3x384xf32>
    %c0_44 = arith.constant 0 : index
    %c0_45 = arith.constant 0 : index
    %c0_46 = arith.constant 0 : index
    %128 = vector.load %arg9[%c0_44, %c0_45, %c0_46] : memref<1x3x384xf32, #tpu.memory_space<vmem>>, vector<1x3x384xf32>
    %129 = vector.shape_cast %128 : vector<1x3x384xf32> to vector<3x384xf32>
    %130 = vector.shape_cast %127 : vector<3x384xf32> to vector<1x3x384xf32>
    tpu.vector_store %arg9[%c0_44, %c0_45, %c0_46], %130 {strides = array<i32>} : memref<1x3x384xf32, #tpu.memory_space<vmem>>, vector<1x3x384xf32>,
    return
  }
  func.func @transform_0(%arg0: i32, %arg1: i32) -> (i32, i32, i32, i32) {
    %c0_i32 = arith.constant 0 : i32
    %c0_i32_0 = arith.constant 0 : i32
    %c0_i32_1 = arith.constant 0 : i32
    return %c0_i32, %arg0, %arg1, %c0_i32_0 : i32, i32, i32, i32
  }
  func.func @transform_1(%arg0: i32, %arg1: i32) -> (i32, i32) {
    %c0_i32 = arith.constant 0 : i32
    %c0_i32_0 = arith.constant 0 : i32
    %c0_i32_1 = arith.constant 0 : i32
    return %c0_i32, %c0_i32_0 : i32, i32
  }
  func.func @transform_2(%arg0: i32, %arg1: i32) -> (i32, i32) {
    %c0_i32 = arith.constant 0 : i32
    %c0_i32_0 = arith.constant 0 : i32
    %c0_i32_1 = arith.constant 0 : i32
    return %c0_i32, %c0_i32_0 : i32, i32
  }
  func.func @transform_3(%arg0: i32, %arg1: i32) -> (i32, i32) {
    %c0_i32 = arith.constant 0 : i32
    %c0_i32_0 = arith.constant 0 : i32
    %c0_i32_1 = arith.constant 0 : i32
    return %c0_i32, %c0_i32_0 : i32, i32
  }
  func.func @transform_4(%arg0: i32, %arg1: i32) -> (i32, i32) {
    %c0_i32 = arith.constant 0 : i32
    %c0_i32_0 = arith.constant 0 : i32
    %c0_i32_1 = arith.constant 0 : i32
    return %c0_i32, %c0_i32_0 : i32, i32
  }
  func.func @transform_5(%arg0: i32, %arg1: i32) -> (i32, i32) {
    %c0_i32 = arith.constant 0 : i32
    %c0_i32_0 = arith.constant 0 : i32
    %c0_i32_1 = arith.constant 0 : i32
    return %c0_i32, %c0_i32_0 : i32, i32
  }
  func.func @transform_6(%arg0: i32, %arg1: i32) -> (i32, i32) {
    %c0_i32 = arith.constant 0 : i32
    %c0_i32_0 = arith.constant 0 : i32
    %c0_i32_1 = arith.constant 0 : i32
    return %c0_i32, %c0_i32_0 : i32, i32
  }
  func.func @transform_7(%arg0: i32, %arg1: i32) -> (i32, i32, i32) {
    %c0_i32 = arith.constant 0 : i32
    %c0_i32_0 = arith.constant 0 : i32
    %c0_i32_1 = arith.constant 0 : i32
    return %arg0, %c0_i32, %c0_i32_0 : i32, i32, i32
  }
}

</mosaic_0001>

<llo_original>
// kernel: evstnkd_forward.2
$region0: #{evstnkd_forward.2}
  #allocation0 [shape = 'u32[]', space=smem, size = 0x4, offset = 0x4, fixed_abs, tag = 'smem constant byte address 0x4 - core index']
  #allocation1 [shape = 'u32[72,128]{1,0:T(1,128)}', space=vmem, size = 0x9000, scoped, tag = 'internal scratch']
  %s0 = inlined_call_operand.vmem [shape: f32[3,2,16,64], index: 0, kind: input, shape index: {}]
  %s1 = inlined_call_operand.hbm [shape: f32[64,128], index: 1, kind: input, shape index: {}]
  %s2 = inlined_call_operand.hbm [shape: f32[64,128], index: 2, kind: input, shape index: {}]
  %s3 = inlined_call_operand.hbm [shape: f32[128,128], index: 3, kind: input, shape index: {}]
  %s4 = inlined_call_operand.hbm [shape: f32[128,128], index: 4, kind: input, shape index: {}]
  %s5 = inlined_call_operand.hbm [shape: f32[128,384], index: 5, kind: input, shape index: {}]
  %s6 = inlined_call_operand.hbm [shape: f32[128,384], index: 6, kind: input, shape index: {}]
  %s7 = inlined_call_operand.vmem [shape: f32[2,3,384], index: 7, kind: output, shape index: {}]
  %s8 = sld [smem:[#allocation0]]
  $region127: #{evstnkd_forward.2} parent=0
    _
  %s10 = ssub.s32 1, %s8
  %s11 = scalar_select 0, %s10, %s8
  $region1: #{evstnkd_forward.2} parent=0
    #allocation2 [shape = 'u8[49152]{0}', space=vmem, size = 0xc000, scoped, tag = 'input window, operand 0']
    #allocation3 [shape = 'u8[32768]{0}', space=vmem, size = 0x8000, scoped, tag = 'input window, operand 1, single buffered']
    #allocation4 [shape = 's32[2]{0}', space=sflag, size = 0x8, scoped, tag = 'scoped memory for evstnkd_forward.2']
    #allocation5 [shape = 'u8[32768]{0}', space=vmem, size = 0x8000, scoped, tag = 'input window, operand 2, single buffered']
    #allocation6 [shape = 's32[1]{0}', space=sflag, size = 0x4, scoped, tag = 'scoped memory for evstnkd_forward.2']
    #allocation7 [shape = 'u8[65536]{0}', space=vmem, size = 0x10000, scoped, tag = 'input window, operand 3, single buffered']
    #allocation8 [shape = 'u8[65536]{0}', space=vmem, size = 0x10000, scoped, tag = 'input window, operand 4, single buffered']
    #allocation9 [shape = 's32[1]{0}', space=sflag, size = 0x4, scoped, tag = 'scoped memory for evstnkd_forward.2']
    #allocation10 [shape = 'u8[196608]{0}', space=vmem, size = 0x30000, scoped, tag = 'input window, operand 5, single buffered']
    #allocation11 [shape = 'u8[196608]{0}', space=vmem, size = 0x30000, scoped, tag = 'input window, operand 6, single buffered']
    #allocation12 [shape = 's32[1]{0}', space=sflag, size = 0x4, scoped, tag = 'scoped memory for evstnkd_forward.2']
    %12 = vsyncpa [#allocation4], 0
    %13 = vsyncpa [#allocation6], 0
    %14 = vsyncpa [#allocation9], 0
    %15 = vsyncpa [#allocation12], 0
    loop: start=0, step=1, limit=4
    $region2: #{evstnkd_forward.2} parent=1 // loop_pre_header
      _
    $region3: #{evstnkd_forward.2} parent=1 // loop_header
      %s17 = sphi 0, %s21
      %p18 = scmp.ge.s32.totalorder %s17, 4
      %s24 = sphi 0, %s36
      %s25 = sphi 0, %s32
      %s26 = sphi 0, %s24
      %s27 = sphi 0, %s25
      %s28 = sphi 0, %s26
      %s29 = sphi 0, %s27
      %s41 = sphi 0, %s43
      %s44 = sphi 0, %s41
      %s45 = sphi 0, %s44
      %s61 = sphi 0, %s45
      %s65 = sphi 0, %s65
      %s67 = sphi 0, %s65
      %s68 = sphi 0, %s67
      %s82 = sphi 0, %s68
      %s86 = sphi 0, %s86
      %s88 = sphi 0, %s86
      %s89 = sphi 0, %s88
      %s103 = sphi 0, %s89
      %s107 = sphi 0, %s107
      %s109 = sphi 0, %s107
      %s110 = sphi 0, %s109
      %s124 = sphi 0, %s110
      %s128 = sphi 0, %s128
      %s130 = sphi 0, %s128
      %s131 = sphi 0, %s130
      %s145 = sphi 0, %s131
      %s149 = sphi 0, %s149
      %s151 = sphi 0, %s149
      %s152 = sphi 0, %s151
      %s166 = sphi 0, %s152
      %s170 = sphi 0, %s170
      %s172 = sphi 0, %s170
      %s173 = sphi 0, %s172
      %s187 = sphi 0, %s173
      %s193 = sphi 0, %s195
      %s196 = sphi 0, %s193
      %s197 = sphi 0, %s196
      %s213 = sphi 0, %s197
    $region4: #{evstnkd_forward.2} parent=1 // loop_header_branch
      %20 = sbr.rel (%p18) target = $region8
    $region5: #{evstnkd_forward.2} parent=1 // loop_body
      %s22 = ssub.s32 %s17, 1
      %s23 = ssub.s32 %s17, 2
      %s30 = sadd.s32 1, %s25
      %p31 = scmp.ge.s32.totalorder %s30, 1
      %s32 = scalar_select %p31, 0, %s30
      %s33 = sadd.s32 1, %s24
      %s34 = scalar_select %p31, %s33, %s24
      %p35 = scmp.ge.s32.totalorder %s34, 2
      %s36 = scalar_select %p35, 0, %s34
      %s37 = ssub.s32 %s24, %s36
      %s38 = ssub.s32 %s25, %s32
      %s39 = sor.u32 %s37, %s38
      %p40 = scmp.eq.s32.totalorder %s39, 0
      %s42 = sadd.s32 %s41, 1
      %s43 = scalar_select %p40, %s41, %s42
      %p46 = pneg %p40
      %p47 = scmp.eq.s32.totalorder %s17, 1
      %p48 = por %p46, %p47
      %p49 = scmp.ne.s32.totalorder %s41, %s44
      %p50 = scmp.eq.s32.totalorder %s17, 0
      %p51 = por %p49, %p50
      %p52 = scmp.ne.s32.totalorder %s41, %s44
      %p53 = scmp.eq.s32.totalorder %s22, 1
      %p54 = por %p52, %p53
      %p55 = scmp.ne.s32.totalorder %s44, %s45
      %p56 = scmp.eq.s32.totalorder %s22, 0
      %p57 = por %p55, %p56
      %p58 = scmp.ne.s32.totalorder %s44, %s45
      %p59 = scmp.eq.s32.totalorder %s23, 1
      %p60 = por %p58, %p59
      %p62 = scmp.ne.s32.totalorder %s45, %s61
      %p63 = scmp.eq.s32.totalorder %s23, 0
      %p64 = por %p62, %p63
      %s66 = sadd.s32 %s65, 1
      %p69 = scmp.eq.s32.totalorder %s17, 1
      %p70 = scmp.ne.s32.totalorder %s65, %s67
      %p71 = scmp.eq.s32.totalorder %s17, 0
      %p72 = por %p70, %p71
      %p73 = scmp.ne.s32.totalorder %s65, %s67
      %p74 = scmp.eq.s32.totalorder %s22, 1
      %p75 = por %p73, %p74
      %p76 = scmp.ne.s32.totalorder %s67, %s68
      %p77 = scmp.eq.s32.totalorder %s22, 0
      %p78 = por %p76, %p77
      %p79 = scmp.ne.s32.totalorder %s67, %s68
      %p80 = scmp.eq.s32.totalorder %s23, 1
      %p81 = por %p79, %p80
      %p83 = scmp.ne.s32.totalorder %s68, %s82
      %p84 = scmp.eq.s32.totalorder %s23, 0
      %p85 = por %p83, %p84
      %s87 = sadd.s32 %s86, 1
      %p90 = scmp.eq.s32.totalorder %s17, 1
      %p91 = scmp.ne.s32.totalorder %s86, %s88
      %p92 = scmp.eq.s32.totalorder %s17, 0
      %p93 = por %p91, %p92
      %p94 = scmp.ne.s32.totalorder %s86, %s88
      %p95 = scmp.eq.s32.totalorder %s22, 1
      %p96 = por %p94, %p95
      %p97 = scmp.ne.s32.totalorder %s88, %s89
      %p98 = scmp.eq.s32.totalorder %s22, 0
      %p99 = por %p97, %p98
      %p100 = scmp.ne.s32.totalorder %s88, %s89
      %p101 = scmp.eq.s32.totalorder %s23, 1
      %p102 = por %p100, %p101
      %p104 = scmp.ne.s32.totalorder %s89, %s103
      %p105 = scmp.eq.s32.totalorder %s23, 0
      %p106 = por %p104, %p105
      %s108 = sadd.s32 %s107, 1
      %p111 = scmp.eq.s32.totalorder %s17, 1
      %p112 = scmp.ne.s32.totalorder %s107, %s109
      %p113 = scmp.eq.s32.totalorder %s17, 0
      %p114 = por %p112, %p113
      %p115 = scmp.ne.s32.totalorder %s107, %s109
      %p116 = scmp.eq.s32.totalorder %s22, 1
      %p117 = por %p115, %p116
      %p118 = scmp.ne.s32.totalorder %s109, %s110
      %p119 = scmp.eq.s32.totalorder %s22, 0
      %p120 = por %p118, %p119
      %p121 = scmp.ne.s32.totalorder %s109, %s110
      %p122 = scmp.eq.s32.totalorder %s23, 1
      %p123 = por %p121, %p122
      %p125 = scmp.ne.s32.totalorder %s110, %s124
      %p126 = scmp.eq.s32.totalorder %s23, 0
      %p127 = por %p125, %p126
      %s129 = sadd.s32 %s128, 1
      %p132 = scmp.eq.s32.totalorder %s17, 1
      %p133 = scmp.ne.s32.totalorder %s128, %s130
      %p134 = scmp.eq.s32.totalorder %s17, 0
      %p135 = por %p133, %p134
      %p136 = scmp.ne.s32.totalorder %s128, %s130
      %p137 = scmp.eq.s32.totalorder %s22, 1
      %p138 = por %p136, %p137
      %p139 = scmp.ne.s32.totalorder %s130, %s131
      %p140 = scmp.eq.s32.totalorder %s22, 0
      %p141 = por %p139, %p140
      %p142 = scmp.ne.s32.totalorder %s130, %s131
      %p143 = scmp.eq.s32.totalorder %s23, 1
      %p144 = por %p142, %p143
      %p146 = scmp.ne.s32.totalorder %s131, %s145
      %p147 = scmp.eq.s32.totalorder %s23, 0
      %p148 = por %p146, %p147
      %s150 = sadd.s32 %s149, 1
      %p153 = scmp.eq.s32.totalorder %s17, 1
      %p154 = scmp.ne.s32.totalorder %s149, %s151
      %p155 = scmp.eq.s32.totalorder %s17, 0
      %p156 = por %p154, %p155
      %p157 = scmp.ne.s32.totalorder %s149, %s151
      %p158 = scmp.eq.s32.totalorder %s22, 1
      %p159 = por %p157, %p158
      %p160 = scmp.ne.s32.totalorder %s151, %s152
      %p161 = scmp.eq.s32.totalorder %s22, 0
      %p162 = por %p160, %p161
      %p163 = scmp.ne.s32.totalorder %s151, %s152
      %p164 = scmp.eq.s32.totalorder %s23, 1
      %p165 = por %p163, %p164
      %p167 = scmp.ne.s32.totalorder %s152, %s166
      %p168 = scmp.eq.s32.totalorder %s23, 0
      %p169 = por %p167, %p168
      %s171 = sadd.s32 %s170, 1
      %p174 = scmp.eq.s32.totalorder %s17, 1
      %p175 = scmp.ne.s32.totalorder %s170, %s172
      %p176 = scmp.eq.s32.totalorder %s17, 0
      %p177 = por %p175, %p176
      %p178 = scmp.ne.s32.totalorder %s170, %s172
      %p179 = scmp.eq.s32.totalorder %s22, 1
      %p180 = por %p178, %p179
      %p181 = scmp.ne.s32.totalorder %s172, %s173
      %p182 = scmp.eq.s32.totalorder %s22, 0
      %p183 = por %p181, %p182
      %p184 = scmp.ne.s32.totalorder %s172, %s173
      %p185 = scmp.eq.s32.totalorder %s23, 1
      %p186 = por %p184, %p185
      %p188 = scmp.ne.s32.totalorder %s173, %s187
      %p189 = scmp.eq.s32.totalorder %s23, 0
      %p190 = por %p188, %p189
      %s191 = ssub.s32 %s24, %s36
      %p192 = scmp.eq.s32.totalorder %s191, 0
      %s194 = sadd.s32 %s193, 1
      %s195 = scalar_select %p192, %s193, %s194
      %p198 = pneg %p192
      %p199 = scmp.eq.s32.totalorder %s17, 1
      %p200 = por %p198, %p199
      %p201 = scmp.ne.s32.totalorder %s193, %s196
      %p202 = scmp.eq.s32.totalorder %s17, 0
      %p203 = por %p201, %p202
      %p204 = scmp.ne.s32.totalorder %s193, %s196
      %p205 = scmp.eq.s32.totalorder %s22, 1
      %p206 = por %p204, %p205
      %p207 = scmp.ne.s32.totalorder %s196, %s197
      %p208 = scmp.eq.s32.totalorder %s22, 0
      %p209 = por %p207, %p208
      %p210 = scmp.ne.s32.totalorder %s196, %s197
      %p211 = scmp.eq.s32.totalorder %s23, 1
      %p212 = por %p210, %p211
      %p214 = scmp.ne.s32.totalorder %s197, %s213
      %p215 = scmp.eq.s32.totalorder %s23, 0
      %p216 = por %p214, %p215
      %p217 = scmp.le.s32.totalorder 1, %s17
      %p218 = scmp.lt.s32.totalorder %s17, 3
      %p219 = pnand %p217, %p218
      %p220 = pneg %p219
      // Predicated region
      $region9: #{evstnkd_forward.2} parent=5 // pred_check
        _
      $region10: #{evstnkd_forward.2} parent=5 // pred_check_branch
        %222 = sbr.rel (%p219) target = $region12
      $region11: #{evstnkd_forward.2} parent=5 // pred_region
        %s223 = ssub.s32 %s17, 1
        // Predicated region
        $region13: #{evstnkd_forward.2} parent=11 // pred_check
          %p224 = pneg %p78
        $region14: #{evstnkd_forward.2} parent=11 // pred_check_branch
          %226 = sbr.rel (%p224) target = $region16
        $region15: #{evstnkd_forward.2} parent=11 // pred_region
          %228 = vsyncadd [#allocation4], 0
          %s229 = sshll.u32 %s1, 4
          %s230 = int_to_ptr.hbm [resolvable:$true] %s229
          %s231 = sshll.u32 [#allocation3], 4
          %s232 = int_to_ptr.vmem [resolvable:$true] %s231
          %237 = dma.hbm_to_vmem [thread:$0]  %s230, 1024, %s232, [#allocation4], 128, 128, 8
        $region16: #{evstnkd_forward.2} parent=11 // pred_fallthru
          _
        // Predicated region
        $region17: #{evstnkd_forward.2} parent=11 // pred_check
          %p238 = pneg %p99
        $region18: #{evstnkd_forward.2} parent=11 // pred_check_branch
          %240 = sbr.rel (%p238) target = $region20
        $region19: #{evstnkd_forward.2} parent=11 // pred_region
          %242 = vsyncadd [#allocation6], 0
          %s243 = sshll.u32 %s2, 4
          %s244 = int_to_ptr.hbm [resolvable:$true] %s243
          %s245 = sshll.u32 [#allocation5], 4
          %s246 = int_to_ptr.vmem [resolvable:$true] %s245
          %251 = dma.hbm_to_vmem [thread:$0]  %s244, 1024, %s246, [#allocation6], 128, 128, 8
        $region20: #{evstnkd_forward.2} parent=11 // pred_fallthru
          _
        // Predicated region
        $region21: #{evstnkd_forward.2} parent=11 // pred_check
          %p252 = pneg %p120
        $region22: #{evstnkd_forward.2} parent=11 // pred_check_branch
          %254 = sbr.rel (%p252) target = $region24
        $region23: #{evstnkd_forward.2} parent=11 // pred_region
          %256 = vsyncadd [#allocation6], 0
          %s257 = sshll.u32 %s3, 4
          %s258 = int_to_ptr.hbm [resolvable:$true] %s257
          %s259 = sshll.u32 [#allocation7], 4
          %s260 = int_to_ptr.vmem [resolvable:$true] %s259
          %265 = dma.hbm_to_vmem [thread:$0]  %s258, 2048, %s260, [#allocation6], 128, 128, 8
        $region24: #{evstnkd_forward.2} parent=11 // pred_fallthru
          _
        // Predicated region
        $region25: #{evstnkd_forward.2} parent=11 // pred_check
          %p266 = pneg %p141
        $region26: #{evstnkd_forward.2} parent=11 // pred_check_branch
          %268 = sbr.rel (%p266) target = $region28
        $region27: #{evstnkd_forward.2} parent=11 // pred_region
          %270 = vsyncadd [#allocation9], 0
          %s271 = sshll.u32 %s4, 4
          %s272 = int_to_ptr.hbm [resolvable:$true] %s271
          %s273 = sshll.u32 [#allocation8], 4
          %s274 = int_to_ptr.vmem [resolvable:$true] %s273
          %279 = dma.hbm_to_vmem [thread:$0]  %s272, 2048, %s274, [#allocation9], 128, 128, 8
        $region28: #{evstnkd_forward.2} parent=11 // pred_fallthru
          _
        // Predicated region
        $region29: #{evstnkd_forward.2} parent=11 // pred_check
          %p280 = pneg %p162
        $region30: #{evstnkd_forward.2} parent=11 // pred_check_branch
          %282 = sbr.rel (%p280) target = $region32
        $region31: #{evstnkd_forward.2} parent=11 // pred_region
          %284 = vsyncadd [#allocation9], 0
          %s285 = sshll.u32 %s5, 4
          %s286 = int_to_ptr.hbm [resolvable:$true] %s285
          %s287 = sshll.u32 [#allocation10], 4
          %s288 = int_to_ptr.vmem [resolvable:$true] %s287
          %293 = dma.hbm_to_vmem [thread:$0]  %s286, 6144, %s288, [#allocation9], 384, 384, 24
        $region32: #{evstnkd_forward.2} parent=11 // pred_fallthru
          _
        // Predicated region
        $region33: #{evstnkd_forward.2} parent=11 // pred_check
          %p294 = pneg %p183
        $region34: #{evstnkd_forward.2} parent=11 // pred_check_branch
          %296 = sbr.rel (%p294) target = $region36
        $region35: #{evstnkd_forward.2} parent=11 // pred_region
          %298 = vsyncadd [#allocation12], 0
          %s299 = sshll.u32 %s6, 4
          %s300 = int_to_ptr.hbm [resolvable:$true] %s299
          %s301 = sshll.u32 [#allocation11], 4
          %s302 = int_to_ptr.vmem [resolvable:$true] %s301
          %307 = dma.hbm_to_vmem [thread:$0]  %s300, 6144, %s302, [#allocation12], 384, 384, 24
        $region36: #{evstnkd_forward.2} parent=11 // pred_fallthru
          _
      $region12: #{evstnkd_forward.2} parent=5 // pred_fallthru
        _
      %p308 = scmp.lt.s32.totalorder %s17, 2
      // Predicated region
      $region37: #{evstnkd_forward.2} parent=5 // pred_check
        %p309 = pneg %p308
      $region38: #{evstnkd_forward.2} parent=5 // pred_check_branch
        %311 = sbr.rel (%p309) target = $region40
      $region39: #{evstnkd_forward.2} parent=5 // pred_region
        // Predicated region
        $region41: #{evstnkd_forward.2} parent=39 // pred_check
          %p312 = pneg %p51
        $region42: #{evstnkd_forward.2} parent=39 // pred_check_branch
          %314 = sbr.rel (%p312) target = $region44
        $region43: #{evstnkd_forward.2} parent=39 // pred_region
          %s315 = sand.u32 %s41, 1
          %s316 = sand.u32 %s41, 1
          %s317 = smul.addr %s316, 48
          %s318 = scalar_lea.vmem [#allocation2], %s317
          %s319 = smul.u32 2, %s25
          %s320 = smul.addr %s24, 2
          %s321 = sadd.s32 %s319, %s320
          %s322 = smul.addr %s321, 8
          %s323 = scalar_lea.vmem %s0, %s322
          // Predicated region
          $region45: #{evstnkd_forward.2} parent=43 // pred_check
            _
          $region46: #{evstnkd_forward.2} parent=43 // pred_check_branch
            %325 = sbr.rel (0) target = $region48
          $region47: #{evstnkd_forward.2} parent=43 // pred_region
            // Predicated region
            $region49: #{evstnkd_forward.2} parent=47 // pred_check
              _
            $region50: #{evstnkd_forward.2} parent=47 // pred_check_branch
              %327 = sbr.rel (0) target = $region52
            $region51: #{evstnkd_forward.2} parent=47 // pred_region
              // Predicated region
              $region64: #{evstnkd_forward.2} parent=51 // pred_check
                _
              $region65: #{evstnkd_forward.2} parent=51 // pred_check_branch
                %353 = sbr.rel (0) target = $region67
              $region66: #{evstnkd_forward.2} parent=51 // pred_region
                loop: start=0, step=1, limit=1
                $region68: #{evstnkd_forward.2} parent=66 // loop_pre_header
                  _
                $region69: #{evstnkd_forward.2} parent=66 // loop_header
                  %s355 = sphi 0, %s359
                  %p356 = scmp.ge.s32.totalorder %s355, 1
                  %s360 = sphi %s323, %s323
                  %s361 = sphi %s318, %s318
                $region70: #{evstnkd_forward.2} parent=66 // loop_header_branch
                  %358 = sbr.rel (%p356) target = $region74
                $region71: #{evstnkd_forward.2} parent=66 // loop_body
                  %v362 = vld [vmem:[%s360] sm:$0xff]
                  %363 = vst [vmem:[%s361] sm:$0xff] %v362
                  %v364 = vld [vmem:[%s360 + $0x8] sm:$0xff]
                  %365 = vst [vmem:[%s361 + $0x8] sm:$0xff] %v364
                  %v366 = vld [vmem:[%s360 + $0x20] sm:$0xff]
                  %367 = vst [vmem:[%s361 + $0x10] sm:$0xff] %v366
                  %v368 = vld [vmem:[%s360 + $0x28] sm:$0xff]
                  %369 = vst [vmem:[%s361 + $0x18] sm:$0xff] %v368
                  %v370 = vld [vmem:[%s360 + $0x40] sm:$0xff]
                  %371 = vst [vmem:[%s361 + $0x20] sm:$0xff] %v370
                  %v372 = vld [vmem:[%s360 + $0x48] sm:$0xff]
                  %373 = vst [vmem:[%s361 + $0x28] sm:$0xff] %v372
                $region72: #{evstnkd_forward.2} parent=66 // loop_footer
                  %s359 = sadd.s32 1, %s355
                $region73: #{evstnkd_forward.2} parent=66 // loop_footer_branch
                  %354 = sbr.rel target = $region69
                $region74: #{evstnkd_forward.2} parent=66 // loop_exit
                  _
              $region67: #{evstnkd_forward.2} parent=51 // pred_fallthru
                _
              // Predicated region
              $region75: #{evstnkd_forward.2} parent=51 // pred_check
                _
              $region76: #{evstnkd_forward.2} parent=51 // pred_check_branch
                %375 = sbr.rel target = $region78
              $region77: #{evstnkd_forward.2} parent=51 // pred_region
                _
              $region78: #{evstnkd_forward.2} parent=51 // pred_fallthru
                _
            $region52: #{evstnkd_forward.2} parent=47 // pred_fallthru
              _
            // Predicated region
            $region53: #{evstnkd_forward.2} parent=47 // pred_check
              _
            $region54: #{evstnkd_forward.2} parent=47 // pred_check_branch
              %329 = sbr.rel target = $region56
            $region55: #{evstnkd_forward.2} parent=47 // pred_region
              %s331 = ssub.s32 256, 1
              loop: start=0, step=1, limit=1
              $region57: #{evstnkd_forward.2} parent=55 // loop_pre_header
                _
              $region58: #{evstnkd_forward.2} parent=55 // loop_header
                %s333 = sphi 0, %s337
                %p334 = scmp.ge.s32.totalorder %s333, 1
                %s338 = sphi %s323, %s323
                %s339 = sphi %s318, %s318
              $region59: #{evstnkd_forward.2} parent=55 // loop_header_branch
                %336 = sbr.rel (%p334) target = $region63
              $region60: #{evstnkd_forward.2} parent=55 // loop_body
                %v340 = vld [vmem:[%s338] sm:%s331]
                %341 = vst [vmem:[%s339] sm:%s331] %v340
                %v342 = vld [vmem:[%s338 + $0x8] sm:%s331]
                %343 = vst [vmem:[%s339 + $0x8] sm:%s331] %v342
                %v344 = vld [vmem:[%s338 + $0x20] sm:%s331]
                %345 = vst [vmem:[%s339 + $0x10] sm:%s331] %v344
                %v346 = vld [vmem:[%s338 + $0x28] sm:%s331]
                %347 = vst [vmem:[%s339 + $0x18] sm:%s331] %v346
                %v348 = vld [vmem:[%s338 + $0x40] sm:%s331]
                %349 = vst [vmem:[%s339 + $0x20] sm:%s331] %v348
                %v350 = vld [vmem:[%s338 + $0x48] sm:%s331]
                %351 = vst [vmem:[%s339 + $0x28] sm:%s331] %v350
              $region61: #{evstnkd_forward.2} parent=55 // loop_footer
                %s337 = sadd.s32 1, %s333
              $region62: #{evstnkd_forward.2} parent=55 // loop_footer_branch
                %332 = sbr.rel target = $region58
              $region63: #{evstnkd_forward.2} parent=55 // loop_exit
                _
            $region56: #{evstnkd_forward.2} parent=47 // pred_fallthru
              _
          $region48: #{evstnkd_forward.2} parent=43 // pred_fallthru
            _
          %376 = vnop
        $region44: #{evstnkd_forward.2} parent=39 // pred_fallthru
          _
      $region40: #{evstnkd_forward.2} parent=5 // pred_fallthru
        _
      %p377 = scmp.le.s32.totalorder 1, %s17
      %p378 = scmp.lt.s32.totalorder %s17, 3
      %p379 = pnand %p377, %p378
      %p380 = pneg %p379
      // Predicated region
      $region79: #{evstnkd_forward.2} parent=5 // pred_check
        _
      $region80: #{evstnkd_forward.2} parent=5 // pred_check_branch
        %382 = sbr.rel (%p379) target = $region82
      $region81: #{evstnkd_forward.2} parent=5 // pred_region
        %s383 = ssub.s32 %s17, 1
        %s384 = sand.u32 %s44, 1
        %s385 = sand.u32 %s44, 1
        %s386 = smul.addr %s385, 48
        %s387 = scalar_lea.vmem [#allocation2], %s386
        // Predicated region
        $region83: #{evstnkd_forward.2} parent=81 // pred_check
          %p388 = pneg %p57
        $region84: #{evstnkd_forward.2} parent=81 // pred_check_branch
          %390 = sbr.rel (%p388) target = $region86
        $region85: #{evstnkd_forward.2} parent=81 // pred_region
          _
        $region86: #{evstnkd_forward.2} parent=81 // pred_fallthru
          _
        // Predicated region
        $region87: #{evstnkd_forward.2} parent=81 // pred_check
          %p391 = pneg %p78
        $region88: #{evstnkd_forward.2} parent=81 // pred_check_branch
          %393 = sbr.rel (%p391) target = $region90
        $region89: #{evstnkd_forward.2} parent=81 // pred_region
          %395 = dma.done [#allocation4], 1024
        $region90: #{evstnkd_forward.2} parent=81 // pred_fallthru
          _
        // Predicated region
        $region91: #{evstnkd_forward.2} parent=81 // pred_check
          %p396 = pneg %p99
        $region92: #{evstnkd_forward.2} parent=81 // pred_check_branch
          %398 = sbr.rel (%p396) target = $region94
        $region93: #{evstnkd_forward.2} parent=81 // pred_region
          %400 = dma.done [#allocation6], 1024
        $region94: #{evstnkd_forward.2} parent=81 // pred_fallthru
          _
        // Predicated region
        $region95: #{evstnkd_forward.2} parent=81 // pred_check
          %p401 = pneg %p120
        $region96: #{evstnkd_forward.2} parent=81 // pred_check_branch
          %403 = sbr.rel (%p401) target = $region98
        $region97: #{evstnkd_forward.2} parent=81 // pred_region
          %405 = dma.done [#allocation6], 2048
        $region98: #{evstnkd_forward.2} parent=81 // pred_fallthru
          _
        // Predicated region
        $region99: #{evstnkd_forward.2} parent=81 // pred_check
          %p406 = pneg %p141
        $region100: #{evstnkd_forward.2} parent=81 // pred_check_branch
          %408 = sbr.rel (%p406) target = $region102
        $region101: #{evstnkd_forward.2} parent=81 // pred_region
          %410 = dma.done [#allocation9], 2048
        $region102: #{evstnkd_forward.2} parent=81 // pred_fallthru
          _
        // Predicated region
        $region103: #{evstnkd_forward.2} parent=81 // pred_check
          %p411 = pneg %p162
        $region104: #{evstnkd_forward.2} parent=81 // pred_check_branch
          %413 = sbr.rel (%p411) target = $region106
        $region105: #{evstnkd_forward.2} parent=81 // pred_region
          %415 = dma.done [#allocation9], 6144
        $region106: #{evstnkd_forward.2} parent=81 // pred_fallthru
          _
        // Predicated region
        $region107: #{evstnkd_forward.2} parent=81 // pred_check
          %p416 = pneg %p183
        $region108: #{evstnkd_forward.2} parent=81 // pred_check_branch
          %418 = sbr.rel (%p416) target = $region110
        $region109: #{evstnkd_forward.2} parent=81 // pred_region
          %420 = dma.done [#allocation12], 6144
        $region110: #{evstnkd_forward.2} parent=81 // pred_fallthru
          _
        %s421 = sand.u32 %s44, 1
        %s422 = sand.u32 %s44, 1
        %s423 = smul.addr %s422, 48
        %s424 = scalar_lea.vmem [#allocation2], %s423
        %p425 = pneg %p57
        %p426 = pneg %p54
        %p427 = pneg %p78
        %p428 = pneg %p75
        %p429 = pneg %p99
        %p430 = pneg %p96
        %p431 = pneg %p120
        %p432 = pneg %p117
        %p433 = pneg %p141
        %p434 = pneg %p138
        %p435 = pneg %p162
        %p436 = pneg %p159
        %p437 = pneg %p183
        %p438 = pneg %p180
        %p439 = pneg %p209
        %p440 = pneg %p206
        %p441 = scmp.lt.s32.totalorder %s26, 1
        %s442 = scalar_select %p441, %s26, 1
        %s443 = smul.addr %s442, 3
        %s444 = smul.addr %s443, 4
        %s445 = scalar_lea.vmem %s7, %s444
        %s446 = smul.u32 2, %s27
        %p447 = scmp.lt.s32.totalorder %s26, 1
        %s448 = scalar_select %p447, %s26, 1
        %s449 = smul.addr %s448, 3
        %s450 = smul.addr %s449, 4
        %s451 = scalar_lea.vmem %s7, %s450
        %p452 = scmp.eq.s32.totalorder %s27, 0
        // Predicated region
        $region111: #{evstnkd_forward.2} parent=81 // pred_check
          %p453 = pneg %p452
        $region112: #{evstnkd_forward.2} parent=81 // pred_check_branch
          %455 = sbr.rel (%p453) target = $region114
        $region113: #{evstnkd_forward.2} parent=81 // pred_region
          %456 = vst [vmem:[%s451] sm:$0x77] 0.0
          %457 = vst [vmem:[%s451 + $0x8] sm:$0x7] 0.0
        $region114: #{evstnkd_forward.2} parent=81 // pred_fallthru
          _
        %v458 = vld [vmem:[%s387] sm:$0xff]
        %v459 = vld [vmem:[%s387 + $0x8] sm:$0xff]
        %s460 = scalar_lea.vmem %s387, 16 [#allocation2]
        %v461 = vld [vmem:[%s460] sm:$0xff]
        %v462 = vld [vmem:[%s460 + $0x8] sm:$0xff]
        %s463 = scalar_lea.vmem %s387, 32 [#allocation2]
        %v464 = vld [vmem:[%s463] sm:$0xff]
        %v465 = vld [vmem:[%s463 + $0x8] sm:$0xff]
        %v466 = vld [vmem:[#allocation3] sm:$0xff]
        %v467 = vld [vmem:[#allocation3 + $0x8] sm:$0xff]
        %v468 = vld [vmem:[#allocation3 + $0x10] sm:$0xff]
        %v469 = vld [vmem:[#allocation3 + $0x18] sm:$0xff]
        %v470 = vld [vmem:[#allocation3 + $0x20] sm:$0xff]
        %v471 = vld [vmem:[#allocation3 + $0x28] sm:$0xff]
        %v472 = vld [vmem:[#allocation3 + $0x30] sm:$0xff]
        %v473 = vld [vmem:[#allocation3 + $0x38] sm:$0xff]
        %v474 = vld [vmem:[#allocation5] sm:$0xff]
        %v475 = vld [vmem:[#allocation5 + $0x8] sm:$0xff]
        %v476 = vld [vmem:[#allocation5 + $0x10] sm:$0xff]
        %v477 = vld [vmem:[#allocation5 + $0x18] sm:$0xff]
        %v478 = vld [vmem:[#allocation5 + $0x20] sm:$0xff]
        %v479 = vld [vmem:[#allocation5 + $0x28] sm:$0xff]
        %v480 = vld [vmem:[#allocation5 + $0x30] sm:$0xff]
        %v481 = vld [vmem:[#allocation5 + $0x38] sm:$0xff]
        %vm482 = vcmask 523264
        %v484 = vsel %vm482, %v458, 0
        %v487 = vsel %vm482, %v459, 0
        %v490 = vsel %vm482, %v461, 0
        %v493 = vsel %vm482, %v462, 0
        %v496 = vsel %vm482, %v464, 0
        %v499 = vsel %vm482, %v465, 0
        %501 = vmatpush.msra.mxu0 0.0
        %502 = vmatpush.msra.mxu0 0.0
        %503 = vmatpush.msra.mxu0 0.0
        %504 = vmatpush.msra.mxu0 0.0
        %505 = vmatpush.msra.mxu0 0.0
        %506 = vmatpush.msra.mxu0 0.0
        %507 = vmatpush.msra.mxu0 0.0
        %508 = vmatpush.msra.mxu0 0.0
        %509 = vmatpush.msra.mxu0 %v473
        %510 = vmatpush.msra.mxu0 %v472
        %511 = vmatpush.msra.mxu0 %v471
        %512 = vmatpush.msra.mxu0 %v470
        %513 = vmatpush.msra.mxu0 %v469
        %514 = vmatpush.msra.mxu0 %v468
        %515 = vmatpush.msra.mxu0 %v467
        %516 = vmatpush.msra.mxu0 %v466
        %517 = vmatmul.f32.gmra.mxu0 %v484
        %v518 = vpop.f32.mrf.mxu0
        %v519 = vadd.f32 0.0, %v518
        %520 = vmatmul.f32.gmra.mxu0 %v487
        %v521 = vpop.f32.mrf.mxu0
        %v522 = vadd.f32 0.0, %v521
        %523 = vmatmul.f32.gmra.mxu0 %v490
        %v524 = vpop.f32.mrf.mxu0
        %v525 = vadd.f32 0.0, %v524
        %526 = vmatmul.f32.gmra.mxu0 %v493
        %v527 = vpop.f32.mrf.mxu0
        %v528 = vadd.f32 0.0, %v527
        %529 = vmatmul.f32.gmra.mxu0 %v496
        %v530 = vpop.f32.mrf.mxu0
        %v531 = vadd.f32 0.0, %v530
        %532 = vmatmul.f32.gmra.mxu0 %v499
        %v533 = vpop.f32.mrf.mxu0
        %v534 = vadd.f32 0.0, %v533
        %535 = vdwg.mxu0
        %536 = vmatpush.msra.mxu0 0.0
        %537 = vmatpush.msra.mxu0 0.0
        %538 = vmatpush.msra.mxu0 0.0
        %539 = vmatpush.msra.mxu0 0.0
        %540 = vmatpush.msra.mxu0 0.0
        %541 = vmatpush.msra.mxu0 0.0
        %542 = vmatpush.msra.mxu0 0.0
        %543 = vmatpush.msra.mxu0 0.0
        %544 = vmatpush.msra.mxu0 %v481
        %545 = vmatpush.msra.mxu0 %v480
        %546 = vmatpush.msra.mxu0 %v479
        %547 = vmatpush.msra.mxu0 %v478
        %548 = vmatpush.msra.mxu0 %v477
        %549 = vmatpush.msra.mxu0 %v476
        %550 = vmatpush.msra.mxu0 %v475
        %551 = vmatpush.msra.mxu0 %v474
        %552 = vmatmul.f32.gmra.mxu0 %v484
        %v553 = vpop.f32.mrf.mxu0
        %v554 = vadd.f32 0.0, %v553
        %555 = vmatmul.f32.gmra.mxu0 %v487
        %v556 = vpop.f32.mrf.mxu0
        %v557 = vadd.f32 0.0, %v556
        %558 = vmatmul.f32.gmra.mxu0 %v490
        %v559 = vpop.f32.mrf.mxu0
        %v560 = vadd.f32 0.0, %v559
        %561 = vmatmul.f32.gmra.mxu0 %v493
        %v562 = vpop.f32.mrf.mxu0
        %v563 = vadd.f32 0.0, %v562
        %564 = vmatmul.f32.gmra.mxu0 %v496
        %v565 = vpop.f32.mrf.mxu0
        %v566 = vadd.f32 0.0, %v565
        %567 = vmatmul.f32.gmra.mxu0 %v499
        %v568 = vpop.f32.mrf.mxu0
        %v569 = vadd.f32 0.0, %v568
        %570 = vdwg.mxu0
        %v571 = vmul.f32 %v519, %v554
        %v572 = vmul.f32 %v522, %v557
        %v573 = vmul.f32 %v525, %v560
        %v574 = vmul.f32 %v528, %v563
        %v575 = vadd.f32 %v571, %v573
        %v576 = vadd.f32 %v572, %v574
        %v577 = vmul.f32 %v531, %v566
        %v578 = vmul.f32 %v534, %v569
        %v579 = vadd.f32 %v575, %v577
        %v580 = vadd.f32 %v576, %v578
        %v581 = vmul.f32 %v554, %v554
        %v582 = vmul.f32 %v557, %v557
        %v583 = vmul.f32 %v560, %v560
        %v584 = vmul.f32 %v563, %v563
        %v585 = vadd.f32 %v581, %v583
        %v586 = vadd.f32 %v582, %v584
        %v587 = vmul.f32 %v566, %v566
        %v588 = vmul.f32 %v569, %v569
        %v589 = vadd.f32 %v585, %v587
        %v590 = vadd.f32 %v586, %v588
        %v591 = vadd.f32 %v589, 1e-06
        %v592 = vadd.f32 %v590, 1e-06
        %v593 = vrcp.pop %v591
        %v594 = vrcp.pop %v592
        %vm595 = vcmp.lt.f32.partialorder %v579, 0.0
        %vm596 = vcmp.lt.f32.partialorder %v580, 0.0
        %v597 = vmul.f32 %v579, %v593
        %v598 = vmul.f32 %v580, %v594
        %v599 = vsel %vm595, %v597, 0.0
        %v600 = vsel %vm596, %v598, 0.0
        %v601 = vmul.f32 %v599, 0.8
        %v602 = vmul.f32 %v600, 0.8
        %v603 = vmul.f32 %v601, %v554
        %v604 = vmul.f32 %v602, %v557
        %v605 = vsub.f32 %v519, %v603
        %v606 = vsub.f32 %v522, %v604
        %v607 = vmul.f32 %v601, %v560
        %v608 = vmul.f32 %v602, %v563
        %v609 = vsub.f32 %v525, %v607
        %v610 = vsub.f32 %v528, %v608
        %v611 = vmul.f32 %v601, %v566
        %v612 = vmul.f32 %v602, %v569
        %v613 = vsub.f32 %v531, %v611
        %v614 = vsub.f32 %v534, %v612
        %v615 = vld [vmem:[#allocation7] sm:$0xff]
        %v616 = vld [vmem:[#allocation7 + $0x8] sm:$0xff]
        %v617 = vld [vmem:[#allocation7 + $0x10] sm:$0xff]
        %v618 = vld [vmem:[#allocation7 + $0x18] sm:$0xff]
        %v619 = vld [vmem:[#allocation7 + $0x20] sm:$0xff]
        %v620 = vld [vmem:[#allocation7 + $0x28] sm:$0xff]
        %v621 = vld [vmem:[#allocation7 + $0x30] sm:$0xff]
        %v622 = vld [vmem:[#allocation7 + $0x38] sm:$0xff]
        %v623 = vld [vmem:[#allocation7 + $0x40] sm:$0xff]
        %v624 = vld [vmem:[#allocation7 + $0x48] sm:$0xff]
        %v625 = vld [vmem:[#allocation7 + $0x50] sm:$0xff]
        %v626 = vld [vmem:[#allocation7 + $0x58] sm:$0xff]
        %v627 = vld [vmem:[#allocation7 + $0x60] sm:$0xff]
        %v628 = vld [vmem:[#allocation7 + $0x68] sm:$0xff]
        %v629 = vld [vmem:[#allocation7 + $0x70] sm:$0xff]
        %v630 = vld [vmem:[#allocation7 + $0x78] sm:$0xff]
        %v631 = vld [vmem:[#allocation8] sm:$0xff]
        %v632 = vld [vmem:[#allocation8 + $0x8] sm:$0xff]
        %v633 = vld [vmem:[#allocation8 + $0x10] sm:$0xff]
        %v634 = vld [vmem:[#allocation8 + $0x18] sm:$0xff]
        %v635 = vld [vmem:[#allocation8 + $0x20] sm:$0xff]
        %v636 = vld [vmem:[#allocation8 + $0x28] sm:$0xff]
        %v637 = vld [vmem:[#allocation8 + $0x30] sm:$0xff]
        %v638 = vld [vmem:[#allocation8 + $0x38] sm:$0xff]
        %v639 = vld [vmem:[#allocation8 + $0x40] sm:$0xff]
        %v640 = vld [vmem:[#allocation8 + $0x48] sm:$0xff]
        %v641 = vld [vmem:[#allocation8 + $0x50] sm:$0xff]
        %v642 = vld [vmem:[#allocation8 + $0x58] sm:$0xff]
        %v643 = vld [vmem:[#allocation8 + $0x60] sm:$0xff]
        %v644 = vld [vmem:[#allocation8 + $0x68] sm:$0xff]
        %v645 = vld [vmem:[#allocation8 + $0x70] sm:$0xff]
        %v646 = vld [vmem:[#allocation8 + $0x78] sm:$0xff]
        %647 = vmatpush.msra.mxu0 %v630
        %648 = vmatpush.msra.mxu0 %v629
        %649 = vmatpush.msra.mxu0 %v628
        %650 = vmatpush.msra.mxu0 %v627
        %651 = vmatpush.msra.mxu0 %v626
        %652 = vmatpush.msra.mxu0 %v625
        %653 = vmatpush.msra.mxu0 %v624
        %654 = vmatpush.msra.mxu0 %v623
        %655 = vmatpush.msra.mxu0 %v622
        %656 = vmatpush.msra.mxu0 %v621
        %657 = vmatpush.msra.mxu0 %v620
        %658 = vmatpush.msra.mxu0 %v619
        %659 = vmatpush.msra.mxu0 %v618
        %660 = vmatpush.msra.mxu0 %v617
        %661 = vmatpush.msra.mxu0 %v616
        %662 = vmatpush.msra.mxu0 %v615
        %663 = vmatmul.f32.gmra.mxu0 %v605
        %v664 = vpop.f32.mrf.mxu0
        %v665 = vadd.f32 0.0, %v664
        %666 = vmatmul.f32.gmra.mxu0 %v606
        %v667 = vpop.f32.mrf.mxu0
        %v668 = vadd.f32 0.0, %v667
        %669 = vmatmul.f32.gmra.mxu0 %v609
        %v670 = vpop.f32.mrf.mxu0
        %v671 = vadd.f32 0.0, %v670
        %672 = vmatmul.f32.gmra.mxu0 %v610
        %v673 = vpop.f32.mrf.mxu0
        %v674 = vadd.f32 0.0, %v673
        %675 = vmatmul.f32.gmra.mxu0 %v613
        %v676 = vpop.f32.mrf.mxu0
        %v677 = vadd.f32 0.0, %v676
        %678 = vmatmul.f32.gmra.mxu0 %v614
        %v679 = vpop.f32.mrf.mxu0
        %v680 = vadd.f32 0.0, %v679
        %681 = vdwg.mxu0
        %682 = vmatpush.msra.mxu0 %v646
        %683 = vmatpush.msra.mxu0 %v645
        %684 = vmatpush.msra.mxu0 %v644
        %685 = vmatpush.msra.mxu0 %v643
        %686 = vmatpush.msra.mxu0 %v642
        %687 = vmatpush.msra.mxu0 %v641
        %688 = vmatpush.msra.mxu0 %v640
        %689 = vmatpush.msra.mxu0 %v639
        %690 = vmatpush.msra.mxu0 %v638
        %691 = vmatpush.msra.mxu0 %v637
        %692 = vmatpush.msra.mxu0 %v636
        %693 = vmatpush.msra.mxu0 %v635
        %694 = vmatpush.msra.mxu0 %v634
        %695 = vmatpush.msra.mxu0 %v633
        %696 = vmatpush.msra.mxu0 %v632
        %697 = vmatpush.msra.mxu0 %v631
        %698 = vmatmul.f32.gmra.mxu0 %v605
        %v699 = vpop.f32.mrf.mxu0
        %v700 = vadd.f32 0.0, %v699
        %701 = vmatmul.f32.gmra.mxu0 %v606
        %v702 = vpop.f32.mrf.mxu0
        %v703 = vadd.f32 0.0, %v702
        %704 = vmatmul.f32.gmra.mxu0 %v609
        %v705 = vpop.f32.mrf.mxu0
        %v706 = vadd.f32 0.0, %v705
        %707 = vmatmul.f32.gmra.mxu0 %v610
        %v708 = vpop.f32.mrf.mxu0
        %v709 = vadd.f32 0.0, %v708
        %710 = vmatmul.f32.gmra.mxu0 %v613
        %v711 = vpop.f32.mrf.mxu0
        %v712 = vadd.f32 0.0, %v711
        %713 = vmatmul.f32.gmra.mxu0 %v614
        %v714 = vpop.f32.mrf.mxu0
        %v715 = vadd.f32 0.0, %v714
        %716 = vdwg.mxu0
        %v717 = vmul.f32 %v665, %v700
        %v718 = vmul.f32 %v668, %v703
        %v719 = vmul.f32 %v671, %v706
        %v720 = vmul.f32 %v674, %v709
        %v721 = vadd.f32 %v717, %v719
        %v722 = vadd.f32 %v718, %v720
        %v723 = vmul.f32 %v677, %v712
        %v724 = vmul.f32 %v680, %v715
        %v725 = vadd.f32 %v721, %v723
        %v726 = vadd.f32 %v722, %v724
        %v727 = vmul.f32 %v700, %v700
        %v728 = vmul.f32 %v703, %v703
        %v729 = vmul.f32 %v706, %v706
        %v730 = vmul.f32 %v709, %v709
        %v731 = vadd.f32 %v727, %v729
        %v732 = vadd.f32 %v728, %v730
        %v733 = vmul.f32 %v712, %v712
        %v734 = vmul.f32 %v715, %v715
        %v735 = vadd.f32 %v731, %v733
        %v736 = vadd.f32 %v732, %v734
        %v737 = vadd.f32 %v735, 1e-06
        %v738 = vadd.f32 %v736, 1e-06
        %v739 = vrcp.pop %v737
        %v740 = vrcp.pop %v738
        %vm741 = vcmp.lt.f32.partialorder %v725, 0.0
        %vm742 = vcmp.lt.f32.partialorder %v726, 0.0
        %v743 = vmul.f32 %v725, %v739
        %v744 = vmul.f32 %v726, %v740
        %v745 = vsel %vm741, %v743, 0.0
        %v746 = vsel %vm742, %v744, 0.0
        %v747 = vmul.f32 %v745, 0.8
        %v748 = vmul.f32 %v746, 0.8
        %v749 = vmul.f32 %v747, %v700
        %v750 = vmul.f32 %v748, %v703
        %v751 = vsub.f32 %v665, %v749
        %v752 = vsub.f32 %v668, %v750
        %v753 = vmul.f32 %v747, %v706
        %v754 = vmul.f32 %v748, %v709
        %v755 = vsub.f32 %v671, %v753
        %v756 = vsub.f32 %v674, %v754
        %v757 = vmul.f32 %v747, %v712
        %v758 = vmul.f32 %v748, %v715
        %v759 = vsub.f32 %v677, %v757
        %v760 = vsub.f32 %v680, %v758
        %v761 = vld [vmem:[#allocation10] sm:$0xff]
        %v762 = vld [vmem:[#allocation10 + $0x8] sm:$0xff]
        %v763 = vld [vmem:[#allocation10 + $0x10] sm:$0xff]
        %v764 = vld [vmem:[#allocation10 + $0x18] sm:$0xff]
        %v765 = vld [vmem:[#allocation10 + $0x20] sm:$0xff]
        %v766 = vld [vmem:[#allocation10 + $0x28] sm:$0xff]
        %v767 = vld [vmem:[#allocation10 + $0x30] sm:$0xff]
        %v768 = vld [vmem:[#allocation10 + $0x38] sm:$0xff]
        %v769 = vld [vmem:[#allocation10 + $0x40] sm:$0xff]
        %v770 = vld [vmem:[#allocation10 + $0x48] sm:$0xff]
        %v771 = vld [vmem:[#allocation10 + $0x50] sm:$0xff]
        %v772 = vld [vmem:[#allocation10 + $0x58] sm:$0xff]
        %v773 = vld [vmem:[#allocation10 + $0x60] sm:$0xff]
        %v774 = vld [vmem:[#allocation10 + $0x68] sm:$0xff]
        %v775 = vld [vmem:[#allocation10 + $0x70] sm:$0xff]
        %v776 = vld [vmem:[#allocation10 + $0x78] sm:$0xff]
        %v777 = vld [vmem:[#allocation10 + $0x80] sm:$0xff]
        %v778 = vld [vmem:[#allocation10 + $0x88] sm:$0xff]
        %v779 = vld [vmem:[#allocation10 + $0x90] sm:$0xff]
        %v780 = vld [vmem:[#allocation10 + $0x98] sm:$0xff]
        %v781 = vld [vmem:[#allocation10 + $0xa0] sm:$0xff]
        %v782 = vld [vmem:[#allocation10 + $0xa8] sm:$0xff]
        %v783 = vld [vmem:[#allocation10 + $0xb0] sm:$0xff]
        %v784 = vld [vmem:[#allocation10 + $0xb8] sm:$0xff]
        %v785 = vld [vmem:[#allocation10 + $0xc0] sm:$0xff]
        %v786 = vld [vmem:[#allocation10 + $0xc8] sm:$0xff]
        %v787 = vld [vmem:[#allocation10 + $0xd0] sm:$0xff]
        %v788 = vld [vmem:[#allocation10 + $0xd8] sm:$0xff]
        %v789 = vld [vmem:[#allocation10 + $0xe0] sm:$0xff]
        %v790 = vld [vmem:[#allocation10 + $0xe8] sm:$0xff]
        %v791 = vld [vmem:[#allocation10 + $0xf0] sm:$0xff]
        %v792 = vld [vmem:[#allocation10 + $0xf8] sm:$0xff]
        %v793 = vld [vmem:[#allocation10 + $0x100] sm:$0xff]
        %v794 = vld [vmem:[#allocation10 + $0x108] sm:$0xff]
        %v795 = vld [vmem:[#allocation10 + $0x110] sm:$0xff]
        %v796 = vld [vmem:[#allocation10 + $0x118] sm:$0xff]
        %v797 = vld [vmem:[#allocation10 + $0x120] sm:$0xff]
        %v798 = vld [vmem:[#allocation10 + $0x128] sm:$0xff]
        %v799 = vld [vmem:[#allocation10 + $0x130] sm:$0xff]
        %v800 = vld [vmem:[#allocation10 + $0x138] sm:$0xff]
        %v801 = vld [vmem:[#allocation10 + $0x140] sm:$0xff]
        %v802 = vld [vmem:[#allocation10 + $0x148] sm:$0xff]
        %v803 = vld [vmem:[#allocation10 + $0x150] sm:$0xff]
        %v804 = vld [vmem:[#allocation10 + $0x158] sm:$0xff]
        %v805 = vld [vmem:[#allocation10 + $0x160] sm:$0xff]
        %v806 = vld [vmem:[#allocation10 + $0x168] sm:$0xff]
        %v807 = vld [vmem:[#allocation10 + $0x170] sm:$0xff]
        %v808 = vld [vmem:[#allocation10 + $0x178] sm:$0xff]
        %v809 = vld [vmem:[#allocation11] sm:$0xff]
        %v810 = vld [vmem:[#allocation11 + $0x8] sm:$0xff]
        %v811 = vld [vmem:[#allocation11 + $0x10] sm:$0xff]
        %v812 = vld [vmem:[#allocation11 + $0x18] sm:$0xff]
        %v813 = vld [vmem:[#allocation11 + $0x20] sm:$0xff]
        %v814 = vld [vmem:[#allocation11 + $0x28] sm:$0xff]
        %v815 = vld [vmem:[#allocation11 + $0x30] sm:$0xff]
        %v816 = vld [vmem:[#allocation11 + $0x38] sm:$0xff]
        %v817 = vld [vmem:[#allocation11 + $0x40] sm:$0xff]
        %v818 = vld [vmem:[#allocation11 + $0x48] sm:$0xff]
        %v819 = vld [vmem:[#allocation11 + $0x50] sm:$0xff]
        %v820 = vld [vmem:[#allocation11 + $0x58] sm:$0xff]
        %v821 = vld [vmem:[#allocation11 + $0x60] sm:$0xff]
        %v822 = vld [vmem:[#allocation11 + $0x68] sm:$0xff]
        %v823 = vld [vmem:[#allocation11 + $0x70] sm:$0xff]
        %v824 = vld [vmem:[#allocation11 + $0x78] sm:$0xff]
        %v825 = vld [vmem:[#allocation11 + $0x80] sm:$0xff]
        %v826 = vld [vmem:[#allocation11 + $0x88] sm:$0xff]
        %v827 = vld [vmem:[#allocation11 + $0x90] sm:$0xff]
        %v828 = vld [vmem:[#allocation11 + $0x98] sm:$0xff]
        %v829 = vld [vmem:[#allocation11 + $0xa0] sm:$0xff]
        %v830 = vld [vmem:[#allocation11 + $0xa8] sm:$0xff]
        %v831 = vld [vmem:[#allocation11 + $0xb0] sm:$0xff]
        %v832 = vld [vmem:[#allocation11 + $0xb8] sm:$0xff]
        %v833 = vld [vmem:[#allocation11 + $0xc0] sm:$0xff]
        %v834 = vld [vmem:[#allocation11 + $0xc8] sm:$0xff]
        %v835 = vld [vmem:[#allocation11 + $0xd0] sm:$0xff]
        %v836 = vld [vmem:[#allocation11 + $0xd8] sm:$0xff]
        %v837 = vld [vmem:[#allocation11 + $0xe0] sm:$0xff]
        %v838 = vld [vmem:[#allocation11 + $0xe8] sm:$0xff]
        %v839 = vld [vmem:[#allocation11 + $0xf0] sm:$0xff]
        %v840 = vld [vmem:[#allocation11 + $0xf8] sm:$0xff]
        %v841 = vld [vmem:[#allocation11 + $0x100] sm:$0xff]
        %v842 = vld [vmem:[#allocation11 + $0x108] sm:$0xff]
        %v843 = vld [vmem:[#allocation11 + $0x110] sm:$0xff]
        %v844 = vld [vmem:[#allocation11 + $0x118] sm:$0xff]
        %v845 = vld [vmem:[#allocation11 + $0x120] sm:$0xff]
        %v846 = vld [vmem:[#allocation11 + $0x128] sm:$0xff]
        %v847 = vld [vmem:[#allocation11 + $0x130] sm:$0xff]
        %v848 = vld [vmem:[#allocation11 + $0x138] sm:$0xff]
        %v849 = vld [vmem:[#allocation11 + $0x140] sm:$0xff]
        %v850 = vld [vmem:[#allocation11 + $0x148] sm:$0xff]
        %v851 = vld [vmem:[#allocation11 + $0x150] sm:$0xff]
        %v852 = vld [vmem:[#allocation11 + $0x158] sm:$0xff]
        %v853 = vld [vmem:[#allocation11 + $0x160] sm:$0xff]
        %v854 = vld [vmem:[#allocation11 + $0x168] sm:$0xff]
        %v855 = vld [vmem:[#allocation11 + $0x170] sm:$0xff]
        %v856 = vld [vmem:[#allocation11 + $0x178] sm:$0xff]
        %857 = vmatpush.msra.mxu0 %v806
        %858 = vmatpush.msra.mxu0 %v803
        %859 = vmatpush.msra.mxu0 %v800
        %860 = vmatpush.msra.mxu0 %v797
        %861 = vmatpush.msra.mxu0 %v794
        %862 = vmatpush.msra.mxu0 %v791
        %863 = vmatpush.msra.mxu0 %v788
        %864 = vmatpush.msra.mxu0 %v785
        %865 = vmatpush.msra.mxu0 %v782
        %866 = vmatpush.msra.mxu0 %v779
        %867 = vmatpush.msra.mxu0 %v776
        %868 = vmatpush.msra.mxu0 %v773
        %869 = vmatpush.msra.mxu0 %v770
        %870 = vmatpush.msra.mxu0 %v767
        %871 = vmatpush.msra.mxu0 %v764
        %872 = vmatpush.msra.mxu0 %v761
        %873 = vmatmul.f32.gmra.mxu0 %v751
        %v874 = vpop.f32.mrf.mxu0
        %v875 = vadd.f32 0.0, %v874
        %876 = vmatmul.f32.gmra.mxu0 %v752
        %v877 = vpop.f32.mrf.mxu0
        %v878 = vadd.f32 0.0, %v877
        %879 = vmatmul.f32.gmra.mxu0 %v755
        %v880 = vpop.f32.mrf.mxu0
        %v881 = vadd.f32 0.0, %v880
        %882 = vmatmul.f32.gmra.mxu0 %v756
        %v883 = vpop.f32.mrf.mxu0
        %v884 = vadd.f32 0.0, %v883
        %885 = vmatmul.f32.gmra.mxu0 %v759
        %v886 = vpop.f32.mrf.mxu0
        %v887 = vadd.f32 0.0, %v886
        %888 = vmatmul.f32.gmra.mxu0 %v760
        %v889 = vpop.f32.mrf.mxu0
        %v890 = vadd.f32 0.0, %v889
        %891 = vdwg.mxu0
        %892 = vmatpush.msra.mxu0 %v807
        %893 = vmatpush.msra.mxu0 %v804
        %894 = vmatpush.msra.mxu0 %v801
        %895 = vmatpush.msra.mxu0 %v798
        %896 = vmatpush.msra.mxu0 %v795
        %897 = vmatpush.msra.mxu0 %v792
        %898 = vmatpush.msra.mxu0 %v789
        %899 = vmatpush.msra.mxu0 %v786
        %900 = vmatpush.msra.mxu0 %v783
        %901 = vmatpush.msra.mxu0 %v780
        %902 = vmatpush.msra.mxu0 %v777
        %903 = vmatpush.msra.mxu0 %v774
        %904 = vmatpush.msra.mxu0 %v771
        %905 = vmatpush.msra.mxu0 %v768
        %906 = vmatpush.msra.mxu0 %v765
        %907 = vmatpush.msra.mxu0 %v762
        %908 = vmatmul.f32.gmra.mxu0 %v751
        %v909 = vpop.f32.mrf.mxu0
        %v910 = vadd.f32 0.0, %v909
        %911 = vmatmul.f32.gmra.mxu0 %v752
        %v912 = vpop.f32.mrf.mxu0
        %v913 = vadd.f32 0.0, %v912
        %914 = vmatmul.f32.gmra.mxu0 %v755
        %v915 = vpop.f32.mrf.mxu0
        %v916 = vadd.f32 0.0, %v915
        %917 = vmatmul.f32.gmra.mxu0 %v756
        %v918 = vpop.f32.mrf.mxu0
        %v919 = vadd.f32 0.0, %v918
        %920 = vmatmul.f32.gmra.mxu0 %v759
        %v921 = vpop.f32.mrf.mxu0
        %v922 = vadd.f32 0.0, %v921
        %923 = vmatmul.f32.gmra.mxu0 %v760
        %v924 = vpop.f32.mrf.mxu0
        %v925 = vadd.f32 0.0, %v924
        %926 = vdwg.mxu0
        %927 = vmatpush.msra.mxu0 %v808
        %928 = vmatpush.msra.mxu0 %v805
        %929 = vmatpush.msra.mxu0 %v802
        %930 = vmatpush.msra.mxu0 %v799
        %931 = vmatpush.msra.mxu0 %v796
        %932 = vmatpush.msra.mxu0 %v793
        %933 = vmatpush.msra.mxu0 %v790
        %934 = vmatpush.msra.mxu0 %v787
        %935 = vmatpush.msra.mxu0 %v784
        %936 = vmatpush.msra.mxu0 %v781
        %937 = vmatpush.msra.mxu0 %v778
        %938 = vmatpush.msra.mxu0 %v775
        %939 = vmatpush.msra.mxu0 %v772
        %940 = vmatpush.msra.mxu0 %v769
        %941 = vmatpush.msra.mxu0 %v766
        %942 = vmatpush.msra.mxu0 %v763
        %943 = vmatmul.f32.gmra.mxu0 %v751
        %v944 = vpop.f32.mrf.mxu0
        %v945 = vadd.f32 0.0, %v944
        %946 = vmatmul.f32.gmra.mxu0 %v752
        %v947 = vpop.f32.mrf.mxu0
        %v948 = vadd.f32 0.0, %v947
        %949 = vmatmul.f32.gmra.mxu0 %v755
        %v950 = vpop.f32.mrf.mxu0
        %v951 = vadd.f32 0.0, %v950
        %952 = vmatmul.f32.gmra.mxu0 %v756
        %v953 = vpop.f32.mrf.mxu0
        %v954 = vadd.f32 0.0, %v953
        %955 = vmatmul.f32.gmra.mxu0 %v759
        %v956 = vpop.f32.mrf.mxu0
        %v957 = vadd.f32 0.0, %v956
        %958 = vmatmul.f32.gmra.mxu0 %v760
        %v959 = vpop.f32.mrf.mxu0
        %v960 = vadd.f32 0.0, %v959
        %961 = vdwg.mxu0
        %962 = vmatpush.msra.mxu0 %v854
        %963 = vmatpush.msra.mxu0 %v851
        %964 = vmatpush.msra.mxu0 %v848
        %965 = vmatpush.msra.mxu0 %v845
        %966 = vmatpush.msra.mxu0 %v842
        %967 = vmatpush.msra.mxu0 %v839
        %968 = vmatpush.msra.mxu0 %v836
        %969 = vmatpush.msra.mxu0 %v833
        %970 = vmatpush.msra.mxu0 %v830
        %971 = vmatpush.msra.mxu0 %v827
        %972 = vmatpush.msra.mxu0 %v824
        %973 = vmatpush.msra.mxu0 %v821
        %974 = vmatpush.msra.mxu0 %v818
        %975 = vmatpush.msra.mxu0 %v815
        %976 = vmatpush.msra.mxu0 %v812
        %977 = vmatpush.msra.mxu0 %v809
        %978 = vmatmul.f32.gmra.mxu0 %v751
        %v979 = vpop.f32.mrf.mxu0
        %v980 = vadd.f32 0.0, %v979
        %981 = vmatmul.f32.gmra.mxu0 %v752
        %v982 = vpop.f32.mrf.mxu0
        %v983 = vadd.f32 0.0, %v982
        %984 = vmatmul.f32.gmra.mxu0 %v755
        %v985 = vpop.f32.mrf.mxu0
        %v986 = vadd.f32 0.0, %v985
        %987 = vmatmul.f32.gmra.mxu0 %v756
        %v988 = vpop.f32.mrf.mxu0
        %v989 = vadd.f32 0.0, %v988
        %990 = vmatmul.f32.gmra.mxu0 %v759
        %v991 = vpop.f32.mrf.mxu0
        %v992 = vadd.f32 0.0, %v991
        %993 = vmatmul.f32.gmra.mxu0 %v760
        %v994 = vpop.f32.mrf.mxu0
        %v995 = vadd.f32 0.0, %v994
        %996 = vdwg.mxu0
        %997 = vmatpush.msra.mxu0 %v855
        %998 = vmatpush.msra.mxu0 %v852
        %999 = vmatpush.msra.mxu0 %v849
        %1000 = vmatpush.msra.mxu0 %v846
        %1001 = vmatpush.msra.mxu0 %v843
        %1002 = vmatpush.msra.mxu0 %v840
        %1003 = vmatpush.msra.mxu0 %v837
        %1004 = vmatpush.msra.mxu0 %v834
        %1005 = vmatpush.msra.mxu0 %v831
        %1006 = vmatpush.msra.mxu0 %v828
        %1007 = vmatpush.msra.mxu0 %v825
        %1008 = vmatpush.msra.mxu0 %v822
        %1009 = vmatpush.msra.mxu0 %v819
        %1010 = vmatpush.msra.mxu0 %v816
        %1011 = vmatpush.msra.mxu0 %v813
        %1012 = vmatpush.msra.mxu0 %v810
        %1013 = vmatmul.f32.gmra.mxu0 %v751
        %v1014 = vpop.f32.mrf.mxu0
        %v1015 = vadd.f32 0.0, %v1014
        %1016 = vmatmul.f32.gmra.mxu0 %v752
        %v1017 = vpop.f32.mrf.mxu0
        %v1018 = vadd.f32 0.0, %v1017
        %1019 = vmatmul.f32.gmra.mxu0 %v755
        %v1020 = vpop.f32.mrf.mxu0
        %v1021 = vadd.f32 0.0, %v1020
        %1022 = vmatmul.f32.gmra.mxu0 %v756
        %v1023 = vpop.f32.mrf.mxu0
        %v1024 = vadd.f32 0.0, %v1023
        %1025 = vmatmul.f32.gmra.mxu0 %v759
        %v1026 = vpop.f32.mrf.mxu0
        %v1027 = vadd.f32 0.0, %v1026
        %1028 = vmatmul.f32.gmra.mxu0 %v760
        %v1029 = vpop.f32.mrf.mxu0
        %v1030 = vadd.f32 0.0, %v1029
        %1031 = vdwg.mxu0
        %1032 = vmatpush.msra.mxu0 %v856
        %1033 = vmatpush.msra.mxu0 %v853
        %1034 = vmatpush.msra.mxu0 %v850
        %1035 = vmatpush.msra.mxu0 %v847
        %1036 = vmatpush.msra.mxu0 %v844
        %1037 = vmatpush.msra.mxu0 %v841
        %1038 = vmatpush.msra.mxu0 %v838
        %1039 = vmatpush.msra.mxu0 %v835
        %1040 = vmatpush.msra.mxu0 %v832
        %1041 = vmatpush.msra.mxu0 %v829
        %1042 = vmatpush.msra.mxu0 %v826
        %1043 = vmatpush.msra.mxu0 %v823
        %1044 = vmatpush.msra.mxu0 %v820
        %1045 = vmatpush.msra.mxu0 %v817
        %1046 = vmatpush.msra.mxu0 %v814
        %1047 = vmatpush.msra.mxu0 %v811
        %1048 = vmatmul.f32.gmra.mxu0 %v751
        %v1049 = vpop.f32.mrf.mxu0
        %v1050 = vadd.f32 0.0, %v1049
        %1051 = vmatmul.f32.gmra.mxu0 %v752
        %v1052 = vpop.f32.mrf.mxu0
        %v1053 = vadd.f32 0.0, %v1052
        %1054 = vmatmul.f32.gmra.mxu0 %v755
        %v1055 = vpop.f32.mrf.mxu0
        %v1056 = vadd.f32 0.0, %v1055
        %1057 = vmatmul.f32.gmra.mxu0 %v756
        %v1058 = vpop.f32.mrf.mxu0
        %v1059 = vadd.f32 0.0, %v1058
        %1060 = vmatmul.f32.gmra.mxu0 %v759
        %v1061 = vpop.f32.mrf.mxu0
        %v1062 = vadd.f32 0.0, %v1061
        %1063 = vmatmul.f32.gmra.mxu0 %v760
        %v1064 = vpop.f32.mrf.mxu0
        %v1065 = vadd.f32 0.0, %v1064
        %1066 = vdwg.mxu0
        %v1067 = vmul.f32 %v875, %v980
        %v1068 = vmul.f32 %v910, %v1015
        %v1069 = vmul.f32 %v945, %v1050
        %v1070 = vmul.f32 %v878, %v983
        %v1071 = vmul.f32 %v913, %v1018
        %v1072 = vmul.f32 %v948, %v1053
        %v1073 = vmul.f32 %v881, %v986
        %v1074 = vmul.f32 %v916, %v1021
        %v1075 = vmul.f32 %v951, %v1056
        %v1076 = vmul.f32 %v884, %v989
        %v1077 = vmul.f32 %v919, %v1024
        %v1078 = vmul.f32 %v954, %v1059
        %v1079 = vadd.f32 %v1067, %v1073
        %v1080 = vadd.f32 %v1068, %v1074
        %v1081 = vadd.f32 %v1069, %v1075
        %v1082 = vadd.f32 %v1070, %v1076
        %v1083 = vadd.f32 %v1071, %v1077
        %v1084 = vadd.f32 %v1072, %v1078
        %v1085 = vmul.f32 %v887, %v992
        %v1086 = vmul.f32 %v922, %v1027
        %v1087 = vmul.f32 %v957, %v1062
        %v1088 = vmul.f32 %v890, %v995
        %v1089 = vmul.f32 %v925, %v1030
        %v1090 = vmul.f32 %v960, %v1065
        %v1091 = vadd.f32 %v1079, %v1085
        %v1092 = vadd.f32 %v1080, %v1086
        %v1093 = vadd.f32 %v1081, %v1087
        %v1094 = vadd.f32 %v1082, %v1088
        %v1095 = vadd.f32 %v1083, %v1089
        %v1096 = vadd.f32 %v1084, %v1090
        %v1097 = vmul.f32 %v980, %v980
        %v1098 = vmul.f32 %v1015, %v1015
        %v1099 = vmul.f32 %v1050, %v1050
        %v1100 = vmul.f32 %v983, %v983
        %v1101 = vmul.f32 %v1018, %v1018
        %v1102 = vmul.f32 %v1053, %v1053
        %v1103 = vmul.f32 %v986, %v986
        %v1104 = vmul.f32 %v1021, %v1021
        %v1105 = vmul.f32 %v1056, %v1056
        %v1106 = vmul.f32 %v989, %v989
        %v1107 = vmul.f32 %v1024, %v1024
        %v1108 = vmul.f32 %v1059, %v1059
        %v1109 = vadd.f32 %v1097, %v1103
        %v1110 = vadd.f32 %v1098, %v1104
        %v1111 = vadd.f32 %v1099, %v1105
        %v1112 = vadd.f32 %v1100, %v1106
        %v1113 = vadd.f32 %v1101, %v1107
        %v1114 = vadd.f32 %v1102, %v1108
        %v1115 = vmul.f32 %v992, %v992
        %v1116 = vmul.f32 %v1027, %v1027
        %v1117 = vmul.f32 %v1062, %v1062
        %v1118 = vmul.f32 %v995, %v995
        %v1119 = vmul.f32 %v1030, %v1030
        %v1120 = vmul.f32 %v1065, %v1065
        %v1121 = vadd.f32 %v1109, %v1115
        %v1122 = vadd.f32 %v1110, %v1116
        %v1123 = vadd.f32 %v1111, %v1117
        %v1124 = vadd.f32 %v1112, %v1118
        %v1125 = vadd.f32 %v1113, %v1119
        %v1126 = vadd.f32 %v1114, %v1120
        %v1127 = vadd.f32 %v1121, 1e-06
        %v1128 = vadd.f32 %v1122, 1e-06
        %v1129 = vadd.f32 %v1123, 1e-06
        %v1130 = vadd.f32 %v1124, 1e-06
        %v1131 = vadd.f32 %v1125, 1e-06
        %v1132 = vadd.f32 %v1126, 1e-06
        %v1133 = vrcp.pop %v1127
        %v1134 = vrcp.pop %v1128
        %v1135 = vrcp.pop %v1129
        %v1136 = vrcp.pop %v1130
        %v1137 = vrcp.pop %v1131
        %v1138 = vrcp.pop %v1132
        %vm1139 = vcmp.lt.f32.partialorder %v1091, 0.0
        %vm1140 = vcmp.lt.f32.partialorder %v1092, 0.0
        %vm1141 = vcmp.lt.f32.partialorder %v1093, 0.0
        %vm1142 = vcmp.lt.f32.partialorder %v1094, 0.0
        %vm1143 = vcmp.lt.f32.partialorder %v1095, 0.0
        %vm1144 = vcmp.lt.f32.partialorder %v1096, 0.0
        %v1145 = vmul.f32 %v1091, %v1133
        %v1146 = vmul.f32 %v1092, %v1134
        %v1147 = vmul.f32 %v1093, %v1135
        %v1148 = vmul.f32 %v1094, %v1136
        %v1149 = vmul.f32 %v1095, %v1137
        %v1150 = vmul.f32 %v1096, %v1138
        %v1151 = vsel %vm1139, %v1145, 0.0
        %v1152 = vsel %vm1140, %v1146, 0.0
        %v1153 = vsel %vm1141, %v1147, 0.0
        %v1154 = vsel %vm1142, %v1148, 0.0
        %v1155 = vsel %vm1143, %v1149, 0.0
        %v1156 = vsel %vm1144, %v1150, 0.0
        %v1157 = vmul.f32 %v1151, 0.8
        %v1158 = vmul.f32 %v1152, 0.8
        %v1159 = vmul.f32 %v1153, 0.8
        %v1160 = vmul.f32 %v1154, 0.8
        %v1161 = vmul.f32 %v1155, 0.8
        %v1162 = vmul.f32 %v1156, 0.8
        %v1163 = vmul.f32 %v1157, %v980
        %v1164 = vmul.f32 %v1158, %v1015
        %v1165 = vmul.f32 %v1159, %v1050
        %v1166 = vmul.f32 %v1160, %v983
        %v1167 = vmul.f32 %v1161, %v1018
        %v1168 = vmul.f32 %v1162, %v1053
        %v1169 = vsub.f32 %v875, %v1163
        %v1170 = vsub.f32 %v910, %v1164
        %v1171 = vsub.f32 %v945, %v1165
        %v1172 = vsub.f32 %v878, %v1166
        %v1173 = vsub.f32 %v913, %v1167
        %v1174 = vsub.f32 %v948, %v1168
        %v1175 = vmul.f32 %v1157, %v986
        %v1176 = vmul.f32 %v1158, %v1021
        %v1177 = vmul.f32 %v1159, %v1056
        %v1178 = vmul.f32 %v1160, %v989
        %v1179 = vmul.f32 %v1161, %v1024
        %v1180 = vmul.f32 %v1162, %v1059
        %v1181 = vsub.f32 %v881, %v1175
        %v1182 = vsub.f32 %v916, %v1176
        %v1183 = vsub.f32 %v951, %v1177
        %v1184 = vsub.f32 %v884, %v1178
        %v1185 = vsub.f32 %v919, %v1179
        %v1186 = vsub.f32 %v954, %v1180
        %v1187 = vmul.f32 %v1157, %v992
        %v1188 = vmul.f32 %v1158, %v1027
        %v1189 = vmul.f32 %v1159, %v1062
        %v1190 = vmul.f32 %v1160, %v995
        %v1191 = vmul.f32 %v1161, %v1030
        %v1192 = vmul.f32 %v1162, %v1065
        %v1193 = vsub.f32 %v887, %v1187
        %v1194 = vsub.f32 %v922, %v1188
        %v1195 = vsub.f32 %v957, %v1189
        %v1196 = vsub.f32 %v890, %v1190
        %v1197 = vsub.f32 %v925, %v1191
        %v1198 = vsub.f32 %v960, %v1192
        %v1199 = vadd.f32 %v1169, %v1172
        %v1200 = vrot.slane %v1199, 4
        %v1201 = vadd.f32 %v1199, %v1200
        %v1202 = vrot.slane %v1201, 2
        %v1203 = vadd.f32 %v1201, %v1202
        %v1204 = vrot.slane %v1203, 1
        %v1205 = vadd.f32 %v1203, %v1204
        %v1206 = vadd.f32 %v1170, %v1173
        %v1207 = vrot.slane %v1206, 4
        %v1208 = vadd.f32 %v1206, %v1207
        %v1209 = vrot.slane %v1208, 2
        %v1210 = vadd.f32 %v1208, %v1209
        %v1211 = vrot.slane %v1210, 1
        %v1212 = vadd.f32 %v1210, %v1211
        %v1213 = vadd.f32 %v1171, %v1174
        %v1214 = vrot.slane %v1213, 4
        %v1215 = vadd.f32 %v1213, %v1214
        %v1216 = vrot.slane %v1215, 2
        %v1217 = vadd.f32 %v1215, %v1216
        %v1218 = vrot.slane %v1217, 1
        %v1219 = vadd.f32 %v1217, %v1218
        %v1220 = vadd.f32 %v1181, %v1184
        %v1221 = vrot.slane %v1220, 4
        %v1222 = vadd.f32 %v1220, %v1221
        %v1223 = vrot.slane %v1222, 2
        %v1224 = vadd.f32 %v1222, %v1223
        %v1225 = vrot.slane %v1224, 1
        %v1226 = vadd.f32 %v1224, %v1225
        %v1227 = vadd.f32 %v1182, %v1185
        %v1228 = vrot.slane %v1227, 4
        %v1229 = vadd.f32 %v1227, %v1228
        %v1230 = vrot.slane %v1229, 2
        %v1231 = vadd.f32 %v1229, %v1230
        %v1232 = vrot.slane %v1231, 1
        %v1233 = vadd.f32 %v1231, %v1232
        %v1234 = vadd.f32 %v1183, %v1186
        %v1235 = vrot.slane %v1234, 4
        %v1236 = vadd.f32 %v1234, %v1235
        %v1237 = vrot.slane %v1236, 2
        %v1238 = vadd.f32 %v1236, %v1237
        %v1239 = vrot.slane %v1238, 1
        %v1240 = vadd.f32 %v1238, %v1239
        %v1241 = vadd.f32 %v1193, %v1196
        %v1242 = vrot.slane %v1241, 4
        %v1243 = vadd.f32 %v1241, %v1242
        %v1244 = vrot.slane %v1243, 2
        %v1245 = vadd.f32 %v1243, %v1244
        %v1246 = vrot.slane %v1245, 1
        %v1247 = vadd.f32 %v1245, %v1246
        %v1248 = vadd.f32 %v1194, %v1197
        %v1249 = vrot.slane %v1248, 4
        %v1250 = vadd.f32 %v1248, %v1249
        %v1251 = vrot.slane %v1250, 2
        %v1252 = vadd.f32 %v1250, %v1251
        %v1253 = vrot.slane %v1252, 1
        %v1254 = vadd.f32 %v1252, %v1253
        %v1255 = vadd.f32 %v1195, %v1198
        %v1256 = vrot.slane %v1255, 4
        %v1257 = vadd.f32 %v1255, %v1256
        %v1258 = vrot.slane %v1257, 2
        %v1259 = vadd.f32 %v1257, %v1258
        %v1260 = vrot.slane %v1259, 1
        %v1261 = vadd.f32 %v1259, %v1260
        %v1262 = vld [vmem:[%s451] sm:$0x77]
        %v1263 = vld [vmem:[%s451 + $0x8] sm:$0x7]
        %v1264 = vmul.f32 %v1205, 0.0625
        %v1265 = vmul.f32 %v1212, 0.0625
        %v1266 = vmul.f32 %v1219, 0.0625
        %v1267 = vmul.f32 %v1226, 0.0625
        %v1268 = vmul.f32 %v1233, 0.0625
        %v1269 = vmul.f32 %v1240, 0.0625
        %v1270 = vmul.f32 %v1247, 0.0625
        %v1271 = vmul.f32 %v1254, 0.0625
        %v1272 = vmul.f32 %v1261, 0.0625
        %v1282 = vrot.slane %v1265, 4
        %v1283 = vrot.slane %v1268, 4
        %v1284 = vrot.slane %v1271, 4
        %vm1285 = vcmask 1043456
        %v1286 = vsel %vm1285, %v1264, %v1282
        %v1287 = vsel %vm1285, %v1267, %v1283
        %v1288 = vsel %vm1285, %v1270, %v1284
        %v1289 = vrot.slane %v1287, 7
        %vm1290 = vcmask 1041409
        %v1291 = vsel %vm1290, %v1289, %v1286
        %vm1292 = vcmask 1045509
        %v1293 = vsel %vm1292, %v1289, %v1291
        %v1294 = vrot.slane %v1288, 6
        %vm1295 = vcmask 1042434
        %v1296 = vsel %vm1295, %v1294, %v1293
        %vm1297 = vcmask 1046534
        %v1298 = vsel %vm1297, %v1294, %v1296
        %v1299 = vrot.slane %v1269, 7
        %v1300 = vsel %vm1290, %v1299, %v1266
        %v1301 = vsel %vm1292, %v1299, %v1300
        %v1302 = vrot.slane %v1272, 6
        %v1303 = vsel %vm1295, %v1302, %v1301
        %v1304 = vsel %vm1297, %v1302, %v1303
        %v1307 = vadd.f32 %v1262, %v1298
        %v1308 = vadd.f32 %v1263, %v1304
        %1309 = vst [vmem:[%s451] sm:$0x77] %v1307
        %1310 = vst [vmem:[%s451 + $0x8] sm:$0x7] %v1308
        %p1311 = scmp.lt.s32.totalorder %s26, 1
        %s1312 = scalar_select %p1311, %s26, 1
        %s1313 = smul.addr %s1312, 3
        %s1314 = smul.addr %s1313, 4
        %s1315 = scalar_lea.vmem %s7, %s1314
        // Predicated region
        $region115: #{evstnkd_forward.2} parent=81 // pred_check
          %p1316 = pneg %p206
        $region116: #{evstnkd_forward.2} parent=81 // pred_check_branch
          %1318 = sbr.rel (%p1316) target = $region118
        $region117: #{evstnkd_forward.2} parent=81 // pred_region
          _
        $region118: #{evstnkd_forward.2} parent=81 // pred_fallthru
          _
      $region82: #{evstnkd_forward.2} parent=5 // pred_fallthru
        _
      %p1319 = scmp.le.s32.totalorder 2, %s17
      // Predicated region
      $region119: #{evstnkd_forward.2} parent=5 // pred_check
        %p1320 = pneg %p1319
      $region120: #{evstnkd_forward.2} parent=5 // pred_check_branch
        %1322 = sbr.rel (%p1320) target = $region122
      $region121: #{evstnkd_forward.2} parent=5 // pred_region
        %s1323 = ssub.s32 %s17, 2
        // Predicated region
        $region123: #{evstnkd_forward.2} parent=121 // pred_check
          %p1324 = pneg %p212
        $region124: #{evstnkd_forward.2} parent=121 // pred_check_branch
          %1326 = sbr.rel (%p1324) target = $region126
        $region125: #{evstnkd_forward.2} parent=121 // pred_region
          %p1327 = scmp.lt.s32.totalorder %s28, 1
          %s1328 = scalar_select %p1327, %s28, 1
          %s1329 = smul.addr %s1328, 3
          %s1330 = smul.addr %s1329, 4
          %s1331 = scalar_lea.vmem %s7, %s1330
        $region126: #{evstnkd_forward.2} parent=121 // pred_fallthru
          _
      $region122: #{evstnkd_forward.2} parent=5 // pred_fallthru
        _
    $region6: #{evstnkd_forward.2} parent=1 // loop_footer
      %s21 = sadd.s32 1, %s17
    $region7: #{evstnkd_forward.2} parent=1 // loop_footer_branch
      %16 = sbr.rel target = $region3
    $region8: #{evstnkd_forward.2} parent=1 // loop_exit
      _
    %1332 = vsyncpa [#allocation4], 1
    %s1333 = scalar_lea.sflag [#allocation4], 1
    %1334 = vsyncpa %s1333, 1
    %1335 = vsyncpa [#allocation6], 1
    %1336 = vsyncpa [#allocation9], 1
    %1337 = vsyncpa [#allocation12], 1

// kernel: evstnkd_forward.3
$region0: #{evstnkd_forward.3}
  #allocation0 [shape = 'u32[]', space=smem, size = 0x4, offset = 0x4, fixed_abs, tag = 'smem constant byte address 0x4 - core index']
  #allocation1 [shape = 'u32[72,128]{1,0:T(1,128)}', space=vmem, size = 0x9000, scoped, tag = 'internal scratch']
  %s0 = inlined_call_operand.vmem [shape: f32[2,3,384], index: 0, kind: input, shape index: {}]
  %s1 = inlined_call_operand.hbm [shape: f32[384,256], index: 1, kind: input, shape index: {}]
  %s2 = inlined_call_operand.hbm [shape: f32[384,256], index: 2, kind: input, shape index: {}]
  %s3 = inlined_call_operand.vmem [shape: f32[256,128], index: 3, kind: input, shape index: {}]
  %s4 = inlined_call_operand.hbm [shape: f32[256,128], index: 4, kind: input, shape index: {}]
  %s5 = inlined_call_operand.vmem [shape: f32[128,64], index: 5, kind: input, shape index: {}]
  %s6 = inlined_call_operand.vmem [shape: f32[2,3,64], index: 6, kind: output, shape index: {}]
  %s7 = sld [smem:[#allocation0]]
  $region46: #{evstnkd_forward.3} parent=0
    _
  %s9 = ssub.s32 1, %s7
  %s10 = scalar_select 0, %s9, %s7
  $region1: #{evstnkd_forward.3} parent=0
    #allocation2 [shape = 'u8[393216]{0}', space=vmem, size = 0x60000, scoped, tag = 'input window, operand 1, single buffered']
    #allocation3 [shape = 's32[1]{0}', space=sflag, size = 0x4, scoped, tag = 'scoped memory for evstnkd_forward.3']
    #allocation4 [shape = 'u8[393216]{0}', space=vmem, size = 0x60000, scoped, tag = 'input window, operand 2, single buffered']
    #allocation5 [shape = 's32[1]{0}', space=sflag, size = 0x4, scoped, tag = 'scoped memory for evstnkd_forward.3']
    #allocation6 [shape = 'u8[131072]{0}', space=vmem, size = 0x20000, scoped, tag = 'input window, operand 4, single buffered']
    %11 = vsyncpa [#allocation3], 0
    %12 = vsyncpa [#allocation5], 0
    // Predicated region
    $region2: #{evstnkd_forward.3} parent=1 // pred_check
      _
    $region3: #{evstnkd_forward.3} parent=1 // pred_check_branch
      %14 = sbr.rel (0) target = $region5
    $region4: #{evstnkd_forward.3} parent=1 // pred_region
      _
    $region5: #{evstnkd_forward.3} parent=1 // pred_fallthru
      _
    // Predicated region
    $region6: #{evstnkd_forward.3} parent=1 // pred_check
      _
    $region7: #{evstnkd_forward.3} parent=1 // pred_check_branch
      %16 = sbr.rel (0) target = $region9
    $region8: #{evstnkd_forward.3} parent=1 // pred_region
      %18 = vsyncadd [#allocation3], 0
      %s19 = sshll.u32 %s1, 4
      %s20 = int_to_ptr.hbm [resolvable:$true] %s19
      %s21 = sshll.u32 [#allocation2], 4
      %s22 = int_to_ptr.vmem [resolvable:$true] %s21
      %27 = dma.hbm_to_vmem [thread:$0]  %s20, 12288, %s22, [#allocation3], 256, 256, 16
    $region9: #{evstnkd_forward.3} parent=1 // pred_fallthru
      _
    // Predicated region
    $region10: #{evstnkd_forward.3} parent=1 // pred_check
      _
    $region11: #{evstnkd_forward.3} parent=1 // pred_check_branch
      %29 = sbr.rel (0) target = $region13
    $region12: #{evstnkd_forward.3} parent=1 // pred_region
      %31 = vsyncadd [#allocation5], 0
      %s32 = sshll.u32 %s2, 4
      %s33 = int_to_ptr.hbm [resolvable:$true] %s32
      %s34 = sshll.u32 [#allocation4], 4
      %s35 = int_to_ptr.vmem [resolvable:$true] %s34
      %40 = dma.hbm_to_vmem [thread:$0]  %s33, 12288, %s35, [#allocation5], 256, 256, 16
    $region13: #{evstnkd_forward.3} parent=1 // pred_fallthru
      _
    // Predicated region
    $region14: #{evstnkd_forward.3} parent=1 // pred_check
      _
    $region15: #{evstnkd_forward.3} parent=1 // pred_check_branch
      %42 = sbr.rel (0) target = $region17
    $region16: #{evstnkd_forward.3} parent=1 // pred_region
      _
    $region17: #{evstnkd_forward.3} parent=1 // pred_fallthru
      _
    // Predicated region
    $region18: #{evstnkd_forward.3} parent=1 // pred_check
      _
    $region19: #{evstnkd_forward.3} parent=1 // pred_check_branch
      %44 = sbr.rel (0) target = $region21
    $region20: #{evstnkd_forward.3} parent=1 // pred_region
      %46 = vsyncadd [#allocation5], 0
      %s47 = sshll.u32 %s4, 4
      %s48 = int_to_ptr.hbm [resolvable:$true] %s47
      %s49 = sshll.u32 [#allocation6], 4
      %s50 = int_to_ptr.vmem [resolvable:$true] %s49
      %55 = dma.hbm_to_vmem [thread:$0]  %s48, 4096, %s50, [#allocation5], 128, 128, 8
    $region21: #{evstnkd_forward.3} parent=1 // pred_fallthru
      _
    // Predicated region
    $region22: #{evstnkd_forward.3} parent=1 // pred_check
      _
    $region23: #{evstnkd_forward.3} parent=1 // pred_check_branch
      %57 = sbr.rel (0) target = $region25
    $region24: #{evstnkd_forward.3} parent=1 // pred_region
      _
    $region25: #{evstnkd_forward.3} parent=1 // pred_fallthru
      _
    // Predicated region
    $region26: #{evstnkd_forward.3} parent=1 // pred_check
      _
    $region27: #{evstnkd_forward.3} parent=1 // pred_check_branch
      %59 = sbr.rel (0) target = $region29
    $region28: #{evstnkd_forward.3} parent=1 // pred_region
      %61 = dma.done [#allocation3], 12288
    $region29: #{evstnkd_forward.3} parent=1 // pred_fallthru
      _
    // Predicated region
    $region30: #{evstnkd_forward.3} parent=1 // pred_check
      _
    $region31: #{evstnkd_forward.3} parent=1 // pred_check_branch
      %63 = sbr.rel (0) target = $region33
    $region32: #{evstnkd_forward.3} parent=1 // pred_region
      %65 = dma.done [#allocation5], 12288
    $region33: #{evstnkd_forward.3} parent=1 // pred_fallthru
      _
    // Predicated region
    $region34: #{evstnkd_forward.3} parent=1 // pred_check
      _
    $region35: #{evstnkd_forward.3} parent=1 // pred_check_branch
      %67 = sbr.rel (0) target = $region37
    $region36: #{evstnkd_forward.3} parent=1 // pred_region
      %69 = dma.done [#allocation5], 4096
    $region37: #{evstnkd_forward.3} parent=1 // pred_fallthru
      _
    %v70 = vld [vmem:[%s0] sm:$0x77]
    %v71 = vld [vmem:[%s0 + $0x8] sm:$0x7]
    %v72 = vld [vmem:[%s0 + $0xc] sm:$0x77]
    %v73 = vld [vmem:[%s0 + $0x14] sm:$0x7]
    %v74 = vld [vmem:[#allocation2] sm:$0xff]
    %v75 = vld [vmem:[#allocation2 + $0x8] sm:$0xff]
    %v76 = vld [vmem:[#allocation2 + $0x10] sm:$0xff]
    %v77 = vld [vmem:[#allocation2 + $0x18] sm:$0xff]
    %v78 = vld [vmem:[#allocation2 + $0x20] sm:$0xff]
    %v79 = vld [vmem:[#allocation2 + $0x28] sm:$0xff]
    %v80 = vld [vmem:[#allocation2 + $0x30] sm:$0xff]
    %v81 = vld [vmem:[#allocation2 + $0x38] sm:$0xff]
    %v82 = vld [vmem:[#allocation2 + $0x40] sm:$0xff]
    %v83 = vld [vmem:[#allocation2 + $0x48] sm:$0xff]
    %v84 = vld [vmem:[#allocation2 + $0x50] sm:$0xff]
    %v85 = vld [vmem:[#allocation2 + $0x58] sm:$0xff]
    %v86 = vld [vmem:[#allocation2 + $0x60] sm:$0xff]
    %v87 = vld [vmem:[#allocation2 + $0x68] sm:$0xff]
    %v88 = vld [vmem:[#allocation2 + $0x70] sm:$0xff]
    %v89 = vld [vmem:[#allocation2 + $0x78] sm:$0xff]
    %v90 = vld [vmem:[#allocation2 + $0x80] sm:$0xff]
    %v91 = vld [vmem:[#allocation2 + $0x88] sm:$0xff]
    %v92 = vld [vmem:[#allocation2 + $0x90] sm:$0xff]
    %v93 = vld [vmem:[#allocation2 + $0x98] sm:$0xff]
    %v94 = vld [vmem:[#allocation2 + $0xa0] sm:$0xff]
    %v95 = vld [vmem:[#allocation2 + $0xa8] sm:$0xff]
    %v96 = vld [vmem:[#allocation2 + $0xb0] sm:$0xff]
    %v97 = vld [vmem:[#allocation2 + $0xb8] sm:$0xff]
    %v98 = vld [vmem:[#allocation2 + $0xc0] sm:$0xff]
    %v99 = vld [vmem:[#allocation2 + $0xc8] sm:$0xff]
    %v100 = vld [vmem:[#allocation2 + $0xd0] sm:$0xff]
    %v101 = vld [vmem:[#allocation2 + $0xd8] sm:$0xff]
    %v102 = vld [vmem:[#allocation2 + $0xe0] sm:$0xff]
    %v103 = vld [vmem:[#allocation2 + $0xe8] sm:$0xff]
    %v104 = vld [vmem:[#allocation2 + $0xf0] sm:$0xff]
    %v105 = vld [vmem:[#allocation2 + $0xf8] sm:$0xff]
    %v106 = vld [vmem:[#allocation2 + $0x100] sm:$0xff]
    %v107 = vld [vmem:[#allocation2 + $0x108] sm:$0xff]
    %v108 = vld [vmem:[#allocation2 + $0x110] sm:$0xff]
    %v109 = vld [vmem:[#allocation2 + $0x118] sm:$0xff]
    %v110 = vld [vmem:[#allocation2 + $0x120] sm:$0xff]
    %v111 = vld [vmem:[#allocation2 + $0x128] sm:$0xff]
    %v112 = vld [vmem:[#allocation2 + $0x130] sm:$0xff]
    %v113 = vld [vmem:[#allocation2 + $0x138] sm:$0xff]
    %v114 = vld [vmem:[#allocation2 + $0x140] sm:$0xff]
    %v115 = vld [vmem:[#allocation2 + $0x148] sm:$0xff]
    %v116 = vld [vmem:[#allocation2 + $0x150] sm:$0xff]
    %v117 = vld [vmem:[#allocation2 + $0x158] sm:$0xff]
    %v118 = vld [vmem:[#allocation2 + $0x160] sm:$0xff]
    %v119 = vld [vmem:[#allocation2 + $0x168] sm:$0xff]
    %v120 = vld [vmem:[#allocation2 + $0x170] sm:$0xff]
    %v121 = vld [vmem:[#allocation2 + $0x178] sm:$0xff]
    %v122 = vld [vmem:[#allocation2 + $0x180] sm:$0xff]
    %v123 = vld [vmem:[#allocation2 + $0x188] sm:$0xff]
    %v124 = vld [vmem:[#allocation2 + $0x190] sm:$0xff]
    %v125 = vld [vmem:[#allocation2 + $0x198] sm:$0xff]
    %v126 = vld [vmem:[#allocation2 + $0x1a0] sm:$0xff]
    %v127 = vld [vmem:[#allocation2 + $0x1a8] sm:$0xff]
    %v128 = vld [vmem:[#allocation2 + $0x1b0] sm:$0xff]
    %v129 = vld [vmem:[#allocation2 + $0x1b8] sm:$0xff]
    %v130 = vld [vmem:[#allocation2 + $0x1c0] sm:$0xff]
    %v131 = vld [vmem:[#allocation2 + $0x1c8] sm:$0xff]
    %v132 = vld [vmem:[#allocation2 + $0x1d0] sm:$0xff]
    %v133 = vld [vmem:[#allocation2 + $0x1d8] sm:$0xff]
    %v134 = vld [vmem:[#allocation2 + $0x1e0] sm:$0xff]
    %v135 = vld [vmem:[#allocation2 + $0x1e8] sm:$0xff]
    %v136 = vld [vmem:[#allocation2 + $0x1f0] sm:$0xff]
    %v137 = vld [vmem:[#allocation2 + $0x1f8] sm:$0xff]
    %v138 = vld [vmem:[#allocation2 + $0x200] sm:$0xff]
    %v139 = vld [vmem:[#allocation2 + $0x208] sm:$0xff]
    %v140 = vld [vmem:[#allocation2 + $0x210] sm:$0xff]
    %v141 = vld [vmem:[#allocation2 + $0x218] sm:$0xff]
    %v142 = vld [vmem:[#allocation2 + $0x220] sm:$0xff]
    %v143 = vld [vmem:[#allocation2 + $0x228] sm:$0xff]
    %v144 = vld [vmem:[#allocation2 + $0x230] sm:$0xff]
    %v145 = vld [vmem:[#allocation2 + $0x238] sm:$0xff]
    %v146 = vld [vmem:[#allocation2 + $0x240] sm:$0xff]
    %v147 = vld [vmem:[#allocation2 + $0x248] sm:$0xff]
    %v148 = vld [vmem:[#allocation2 + $0x250] sm:$0xff]
    %v149 = vld [vmem:[#allocation2 + $0x258] sm:$0xff]
    %v150 = vld [vmem:[#allocation2 + $0x260] sm:$0xff]
    %v151 = vld [vmem:[#allocation2 + $0x268] sm:$0xff]
    %v152 = vld [vmem:[#allocation2 + $0x270] sm:$0xff]
    %v153 = vld [vmem:[#allocation2 + $0x278] sm:$0xff]
    %v154 = vld [vmem:[#allocation2 + $0x280] sm:$0xff]
    %v155 = vld [vmem:[#allocation2 + $0x288] sm:$0xff]
    %v156 = vld [vmem:[#allocation2 + $0x290] sm:$0xff]
    %v157 = vld [vmem:[#allocation2 + $0x298] sm:$0xff]
    %v158 = vld [vmem:[#allocation2 + $0x2a0] sm:$0xff]
    %v159 = vld [vmem:[#allocation2 + $0x2a8] sm:$0xff]
    %v160 = vld [vmem:[#allocation2 + $0x2b0] sm:$0xff]
    %v161 = vld [vmem:[#allocation2 + $0x2b8] sm:$0xff]
    %v162 = vld [vmem:[#allocation2 + $0x2c0] sm:$0xff]
    %v163 = vld [vmem:[#allocation2 + $0x2c8] sm:$0xff]
    %v164 = vld [vmem:[#allocation2 + $0x2d0] sm:$0xff]
    %v165 = vld [vmem:[#allocation2 + $0x2d8] sm:$0xff]
    %v166 = vld [vmem:[#allocation2 + $0x2e0] sm:$0xff]
    %v167 = vld [vmem:[#allocation2 + $0x2e8] sm:$0xff]
    %v168 = vld [vmem:[#allocation2 + $0x2f0] sm:$0xff]
    %v169 = vld [vmem:[#allocation2 + $0x2f8] sm:$0xff]
    %v170 = vld [vmem:[#allocation4] sm:$0xff]
    %v171 = vld [vmem:[#allocation4 + $0x8] sm:$0xff]
    %v172 = vld [vmem:[#allocation4 + $0x10] sm:$0xff]
    %v173 = vld [vmem:[#allocation4 + $0x18] sm:$0xff]
    %v174 = vld [vmem:[#allocation4 + $0x20] sm:$0xff]
    %v175 = vld [vmem:[#allocation4 + $0x28] sm:$0xff]
    %v176 = vld [vmem:[#allocation4 + $0x30] sm:$0xff]
    %v177 = vld [vmem:[#allocation4 + $0x38] sm:$0xff]
    %v178 = vld [vmem:[#allocation4 + $0x40] sm:$0xff]
    %v179 = vld [vmem:[#allocation4 + $0x48] sm:$0xff]
    %v180 = vld [vmem:[#allocation4 + $0x50] sm:$0xff]
    %v181 = vld [vmem:[#allocation4 + $0x58] sm:$0xff]
    %v182 = vld [vmem:[#allocation4 + $0x60] sm:$0xff]
    %v183 = vld [vmem:[#allocation4 + $0x68] sm:$0xff]
    %v184 = vld [vmem:[#allocation4 + $0x70] sm:$0xff]
    %v185 = vld [vmem:[#allocation4 + $0x78] sm:$0xff]
    %v186 = vld [vmem:[#allocation4 + $0x80] sm:$0xff]
    %v187 = vld [vmem:[#allocation4 + $0x88] sm:$0xff]
    %v188 = vld [vmem:[#allocation4 + $0x90] sm:$0xff]
    %v189 = vld [vmem:[#allocation4 + $0x98] sm:$0xff]
    %v190 = vld [vmem:[#allocation4 + $0xa0] sm:$0xff]
    %v191 = vld [vmem:[#allocation4 + $0xa8] sm:$0xff]
    %v192 = vld [vmem:[#allocation4 + $0xb0] sm:$0xff]
    %v193 = vld [vmem:[#allocation4 + $0xb8] sm:$0xff]
    %v194 = vld [vmem:[#allocation4 + $0xc0] sm:$0xff]
    %v195 = vld [vmem:[#allocation4 + $0xc8] sm:$0xff]
    %v196 = vld [vmem:[#allocation4 + $0xd0] sm:$0xff]
    %v197 = vld [vmem:[#allocation4 + $0xd8] sm:$0xff]
    %v198 = vld [vmem:[#allocation4 + $0xe0] sm:$0xff]
    %v199 = vld [vmem:[#allocation4 + $0xe8] sm:$0xff]
    %v200 = vld [vmem:[#allocation4 + $0xf0] sm:$0xff]
    %v201 = vld [vmem:[#allocation4 + $0xf8] sm:$0xff]
    %v202 = vld [vmem:[#allocation4 + $0x100] sm:$0xff]
    %v203 = vld [vmem:[#allocation4 + $0x108] sm:$0xff]
    %v204 = vld [vmem:[#allocation4 + $0x110] sm:$0xff]
    %v205 = vld [vmem:[#allocation4 + $0x118] sm:$0xff]
    %v206 = vld [vmem:[#allocation4 + $0x120] sm:$0xff]
    %v207 = vld [vmem:[#allocation4 + $0x128] sm:$0xff]
    %v208 = vld [vmem:[#allocation4 + $0x130] sm:$0xff]
    %v209 = vld [vmem:[#allocation4 + $0x138] sm:$0xff]
    %v210 = vld [vmem:[#allocation4 + $0x140] sm:$0xff]
    %v211 = vld [vmem:[#allocation4 + $0x148] sm:$0xff]
    %v212 = vld [vmem:[#allocation4 + $0x150] sm:$0xff]
    %v213 = vld [vmem:[#allocation4 + $0x158] sm:$0xff]
    %v214 = vld [vmem:[#allocation4 + $0x160] sm:$0xff]
    %v215 = vld [vmem:[#allocation4 + $0x168] sm:$0xff]
    %v216 = vld [vmem:[#allocation4 + $0x170] sm:$0xff]
    %v217 = vld [vmem:[#allocation4 + $0x178] sm:$0xff]
    %v218 = vld [vmem:[#allocation4 + $0x180] sm:$0xff]
    %v219 = vld [vmem:[#allocation4 + $0x188] sm:$0xff]
    %v220 = vld [vmem:[#allocation4 + $0x190] sm:$0xff]
    %v221 = vld [vmem:[#allocation4 + $0x198] sm:$0xff]
    %v222 = vld [vmem:[#allocation4 + $0x1a0] sm:$0xff]
    %v223 = vld [vmem:[#allocation4 + $0x1a8] sm:$0xff]
    %v224 = vld [vmem:[#allocation4 + $0x1b0] sm:$0xff]
    %v225 = vld [vmem:[#allocation4 + $0x1b8] sm:$0xff]
    %v226 = vld [vmem:[#allocation4 + $0x1c0] sm:$0xff]
    %v227 = vld [vmem:[#allocation4 + $0x1c8] sm:$0xff]
    %v228 = vld [vmem:[#allocation4 + $0x1d0] sm:$0xff]
    %v229 = vld [vmem:[#allocation4 + $0x1d8] sm:$0xff]
    %v230 = vld [vmem:[#allocation4 + $0x1e0] sm:$0xff]
    %v231 = vld [vmem:[#allocation4 + $0x1e8] sm:$0xff]
    %v232 = vld [vmem:[#allocation4 + $0x1f0] sm:$0xff]
    %v233 = vld [vmem:[#allocation4 + $0x1f8] sm:$0xff]
    %v234 = vld [vmem:[#allocation4 + $0x200] sm:$0xff]
    %v235 = vld [vmem:[#allocation4 + $0x208] sm:$0xff]
    %v236 = vld [vmem:[#allocation4 + $0x210] sm:$0xff]
    %v237 = vld [vmem:[#allocation4 + $0x218] sm:$0xff]
    %v238 = vld [vmem:[#allocation4 + $0x220] sm:$0xff]
    %v239 = vld [vmem:[#allocation4 + $0x228] sm:$0xff]
    %v240 = vld [vmem:[#allocation4 + $0x230] sm:$0xff]
    %v241 = vld [vmem:[#allocation4 + $0x238] sm:$0xff]
    %v242 = vld [vmem:[#allocation4 + $0x240] sm:$0xff]
    %v243 = vld [vmem:[#allocation4 + $0x248] sm:$0xff]
    %v244 = vld [vmem:[#allocation4 + $0x250] sm:$0xff]
    %v245 = vld [vmem:[#allocation4 + $0x258] sm:$0xff]
    %v246 = vld [vmem:[#allocation4 + $0x260] sm:$0xff]
    %v247 = vld [vmem:[#allocation4 + $0x268] sm:$0xff]
    %v248 = vld [vmem:[#allocation4 + $0x270] sm:$0xff]
    %v249 = vld [vmem:[#allocation4 + $0x278] sm:$0xff]
    %v250 = vld [vmem:[#allocation4 + $0x280] sm:$0xff]
    %v251 = vld [vmem:[#allocation4 + $0x288] sm:$0xff]
    %v252 = vld [vmem:[#allocation4 + $0x290] sm:$0xff]
    %v253 = vld [vmem:[#allocation4 + $0x298] sm:$0xff]
    %v254 = vld [vmem:[#allocation4 + $0x2a0] sm:$0xff]
    %v255 = vld [vmem:[#allocation4 + $0x2a8] sm:$0xff]
    %v256 = vld [vmem:[#allocation4 + $0x2b0] sm:$0xff]
    %v257 = vld [vmem:[#allocation4 + $0x2b8] sm:$0xff]
    %v258 = vld [vmem:[#allocation4 + $0x2c0] sm:$0xff]
    %v259 = vld [vmem:[#allocation4 + $0x2c8] sm:$0xff]
    %v260 = vld [vmem:[#allocation4 + $0x2d0] sm:$0xff]
    %v261 = vld [vmem:[#allocation4 + $0x2d8] sm:$0xff]
    %v262 = vld [vmem:[#allocation4 + $0x2e0] sm:$0xff]
    %v263 = vld [vmem:[#allocation4 + $0x2e8] sm:$0xff]
    %v264 = vld [vmem:[#allocation4 + $0x2f0] sm:$0xff]
    %v265 = vld [vmem:[#allocation4 + $0x2f8] sm:$0xff]
    %v270 = vrot.slane %v70, 3
    %v271 = vrot.slane %v71, 6
    %v272 = vrot.slane %v71, 1
    %v273 = vrot.slane %v72, 3
    %v274 = vrot.slane %v73, 6
    %v275 = vrot.slane %v73, 1
    %vm276 = vcmask 1040384
    %v277 = vsel %vm276, %v70, %v270
    %vm278 = vcmask 1042434
    %v279 = vsel %vm278, %v271, %v272
    %vm280 = vcmask 1041408
    %v281 = vsel %vm280, %v277, %v279
    %vm282 = vcmask 1041409
    %v283 = vsel %vm282, %v70, %v270
    %vm284 = vcmask 1043459
    %v285 = vsel %vm284, %v271, %v272
    %vm286 = vcmask 1042433
    %v287 = vsel %vm286, %v283, %v285
    %v288 = vrot.slane %v287, 1
    %v289 = vsel %vm278, %v70, %v270
    %vm290 = vcmask 1044484
    %v291 = vsel %vm290, %v271, %v272
    %vm292 = vcmask 1043458
    %v293 = vsel %vm292, %v289, %v291
    %v294 = vrot.slane %v293, 2
    %v295 = vsel %vm276, %v72, %v273
    %v296 = vsel %vm278, %v274, %v275
    %v297 = vsel %vm280, %v295, %v296
    %v298 = vsel %vm282, %v72, %v273
    %v299 = vsel %vm284, %v274, %v275
    %v300 = vsel %vm286, %v298, %v299
    %v301 = vrot.slane %v300, 1
    %v302 = vsel %vm278, %v72, %v273
    %v303 = vsel %vm290, %v274, %v275
    %v304 = vsel %vm292, %v302, %v303
    %v305 = vrot.slane %v304, 2
    %306 = vst [vmem:[#allocation1] ss:$9 sm:$0xff] %v281
    %s307 = scalar_lea.vmem [#allocation1], 1
    %308 = vst [vmem:[%s307] ss:$9 sm:$0xff] %v288
    %s309 = scalar_lea.vmem [#allocation1], 2
    %310 = vst [vmem:[%s309] ss:$9 sm:$0xff] %v294
    %s311 = scalar_lea.vmem [#allocation1], 3
    %312 = vst [vmem:[%s311] ss:$9 sm:$0xff] %v297
    %s313 = scalar_lea.vmem [#allocation1], 4
    %314 = vst [vmem:[%s313] ss:$9 sm:$0xff] %v301
    %s315 = scalar_lea.vmem [#allocation1], 5
    %316 = vst [vmem:[%s315] ss:$9 sm:$0xff] %v305
    %v317 = vld [vmem:[#allocation1] sm:$0xff]
    %v318 = vld [vmem:[#allocation1 + $0x9] sm:$0xff]
    %v319 = vld [vmem:[#allocation1 + $0x12] sm:$0xff]
    %323 = vmatpush.msra.mxu0 %v104
    %324 = vmatpush.msra.mxu0 %v102
    %325 = vmatpush.msra.mxu0 %v100
    %326 = vmatpush.msra.mxu0 %v98
    %327 = vmatpush.msra.mxu0 %v96
    %328 = vmatpush.msra.mxu0 %v94
    %329 = vmatpush.msra.mxu0 %v92
    %330 = vmatpush.msra.mxu0 %v90
    %331 = vmatpush.msra.mxu0 %v88
    %332 = vmatpush.msra.mxu0 %v86
    %333 = vmatpush.msra.mxu0 %v84
    %334 = vmatpush.msra.mxu0 %v82
    %335 = vmatpush.msra.mxu0 %v80
    %336 = vmatpush.msra.mxu0 %v78
    %337 = vmatpush.msra.mxu0 %v76
    %338 = vmatpush.msra.mxu0 %v74
    %339 = vmatmul.f32.gmra.mxu0 %v317
    %v340 = vpop.f32.mrf.mxu0
    %v341 = vadd.f32 0.0, %v340
    %342 = vdwg.mxu0
    %343 = vmatpush.msra.mxu0 %v136
    %344 = vmatpush.msra.mxu0 %v134
    %345 = vmatpush.msra.mxu0 %v132
    %346 = vmatpush.msra.mxu0 %v130
    %347 = vmatpush.msra.mxu0 %v128
    %348 = vmatpush.msra.mxu0 %v126
    %349 = vmatpush.msra.mxu0 %v124
    %350 = vmatpush.msra.mxu0 %v122
    %351 = vmatpush.msra.mxu0 %v120
    %352 = vmatpush.msra.mxu0 %v118
    %353 = vmatpush.msra.mxu0 %v116
    %354 = vmatpush.msra.mxu0 %v114
    %355 = vmatpush.msra.mxu0 %v112
    %356 = vmatpush.msra.mxu0 %v110
    %357 = vmatpush.msra.mxu0 %v108
    %358 = vmatpush.msra.mxu0 %v106
    %359 = vmatmul.f32.gmra.mxu0 %v318
    %v360 = vpop.f32.mrf.mxu0
    %v361 = vadd.f32 %v341, %v360
    %362 = vdwg.mxu0
    %363 = vmatpush.msra.mxu0 %v168
    %364 = vmatpush.msra.mxu0 %v166
    %365 = vmatpush.msra.mxu0 %v164
    %366 = vmatpush.msra.mxu0 %v162
    %367 = vmatpush.msra.mxu0 %v160
    %368 = vmatpush.msra.mxu0 %v158
    %369 = vmatpush.msra.mxu0 %v156
    %370 = vmatpush.msra.mxu0 %v154
    %371 = vmatpush.msra.mxu0 %v152
    %372 = vmatpush.msra.mxu0 %v150
    %373 = vmatpush.msra.mxu0 %v148
    %374 = vmatpush.msra.mxu0 %v146
    %375 = vmatpush.msra.mxu0 %v144
    %376 = vmatpush.msra.mxu0 %v142
    %377 = vmatpush.msra.mxu0 %v140
    %378 = vmatpush.msra.mxu0 %v138
    %379 = vmatmul.f32.gmra.mxu0 %v319
    %v380 = vpop.f32.mrf.mxu0
    %v381 = vadd.f32 %v361, %v380
    %382 = vdwg.mxu0
    %383 = vmatpush.msra.mxu0 %v105
    %384 = vmatpush.msra.mxu0 %v103
    %385 = vmatpush.msra.mxu0 %v101
    %386 = vmatpush.msra.mxu0 %v99
    %387 = vmatpush.msra.mxu0 %v97
    %388 = vmatpush.msra.mxu0 %v95
    %389 = vmatpush.msra.mxu0 %v93
    %390 = vmatpush.msra.mxu0 %v91
    %391 = vmatpush.msra.mxu0 %v89
    %392 = vmatpush.msra.mxu0 %v87
    %393 = vmatpush.msra.mxu0 %v85
    %394 = vmatpush.msra.mxu0 %v83
    %395 = vmatpush.msra.mxu0 %v81
    %396 = vmatpush.msra.mxu0 %v79
    %397 = vmatpush.msra.mxu0 %v77
    %398 = vmatpush.msra.mxu0 %v75
    %399 = vmatmul.f32.gmra.mxu0 %v317
    %v400 = vpop.f32.mrf.mxu0
    %v401 = vadd.f32 0.0, %v400
    %402 = vdwg.mxu0
    %403 = vmatpush.msra.mxu0 %v137
    %404 = vmatpush.msra.mxu0 %v135
    %405 = vmatpush.msra.mxu0 %v133
    %406 = vmatpush.msra.mxu0 %v131
    %407 = vmatpush.msra.mxu0 %v129
    %408 = vmatpush.msra.mxu0 %v127
    %409 = vmatpush.msra.mxu0 %v125
    %410 = vmatpush.msra.mxu0 %v123
    %411 = vmatpush.msra.mxu0 %v121
    %412 = vmatpush.msra.mxu0 %v119
    %413 = vmatpush.msra.mxu0 %v117
    %414 = vmatpush.msra.mxu0 %v115
    %415 = vmatpush.msra.mxu0 %v113
    %416 = vmatpush.msra.mxu0 %v111
    %417 = vmatpush.msra.mxu0 %v109
    %418 = vmatpush.msra.mxu0 %v107
    %419 = vmatmul.f32.gmra.mxu0 %v318
    %v420 = vpop.f32.mrf.mxu0
    %v421 = vadd.f32 %v401, %v420
    %422 = vdwg.mxu0
    %423 = vmatpush.msra.mxu0 %v169
    %424 = vmatpush.msra.mxu0 %v167
    %425 = vmatpush.msra.mxu0 %v165
    %426 = vmatpush.msra.mxu0 %v163
    %427 = vmatpush.msra.mxu0 %v161
    %428 = vmatpush.msra.mxu0 %v159
    %429 = vmatpush.msra.mxu0 %v157
    %430 = vmatpush.msra.mxu0 %v155
    %431 = vmatpush.msra.mxu0 %v153
    %432 = vmatpush.msra.mxu0 %v151
    %433 = vmatpush.msra.mxu0 %v149
    %434 = vmatpush.msra.mxu0 %v147
    %435 = vmatpush.msra.mxu0 %v145
    %436 = vmatpush.msra.mxu0 %v143
    %437 = vmatpush.msra.mxu0 %v141
    %438 = vmatpush.msra.mxu0 %v139
    %439 = vmatmul.f32.gmra.mxu0 %v319
    %v440 = vpop.f32.mrf.mxu0
    %v441 = vadd.f32 %v421, %v440
    %442 = vdwg.mxu0
    %v445 = vrot.slane %v441, 7
    %v446 = vsel %vm276, %v381, %v445
    %v447 = vsel %vm282, %v381, %v445
    %v448 = vrot.slane %v447, 1
    %v449 = vsel %vm278, %v381, %v445
    %v450 = vrot.slane %v449, 2
    %v451 = vsel %vm284, %v381, %v445
    %v452 = vrot.slane %v451, 3
    %v453 = vsel %vm290, %v381, %v445
    %v454 = vrot.slane %v453, 4
    %vm455 = vcmask 1045509
    %v456 = vsel %vm455, %v381, %v445
    %v457 = vrot.slane %v456, 5
    %464 = vst [vmem:[#allocation1] ss:$9 sm:$0xff] %v281
    %s465 = scalar_lea.vmem [#allocation1], 1
    %466 = vst [vmem:[%s465] ss:$9 sm:$0xff] %v288
    %s467 = scalar_lea.vmem [#allocation1], 2
    %468 = vst [vmem:[%s467] ss:$9 sm:$0xff] %v294
    %s469 = scalar_lea.vmem [#allocation1], 3
    %470 = vst [vmem:[%s469] ss:$9 sm:$0xff] %v297
    %s471 = scalar_lea.vmem [#allocation1], 4
    %472 = vst [vmem:[%s471] ss:$9 sm:$0xff] %v301
    %s473 = scalar_lea.vmem [#allocation1], 5
    %474 = vst [vmem:[%s473] ss:$9 sm:$0xff] %v305
    %v475 = vld [vmem:[#allocation1] sm:$0xff]
    %v476 = vld [vmem:[#allocation1 + $0x9] sm:$0xff]
    %v477 = vld [vmem:[#allocation1 + $0x12] sm:$0xff]
    %481 = vmatpush.msra.mxu0 %v200
    %482 = vmatpush.msra.mxu0 %v198
    %483 = vmatpush.msra.mxu0 %v196
    %484 = vmatpush.msra.mxu0 %v194
    %485 = vmatpush.msra.mxu0 %v192
    %486 = vmatpush.msra.mxu0 %v190
    %487 = vmatpush.msra.mxu0 %v188
    %488 = vmatpush.msra.mxu0 %v186
    %489 = vmatpush.msra.mxu0 %v184
    %490 = vmatpush.msra.mxu0 %v182
    %491 = vmatpush.msra.mxu0 %v180
    %492 = vmatpush.msra.mxu0 %v178
    %493 = vmatpush.msra.mxu0 %v176
    %494 = vmatpush.msra.mxu0 %v174
    %495 = vmatpush.msra.mxu0 %v172
    %496 = vmatpush.msra.mxu0 %v170
    %497 = vmatmul.f32.gmra.mxu0 %v475
    %v498 = vpop.f32.mrf.mxu0
    %v499 = vadd.f32 0.0, %v498
    %500 = vdwg.mxu0
    %501 = vmatpush.msra.mxu0 %v232
    %502 = vmatpush.msra.mxu0 %v230
    %503 = vmatpush.msra.mxu0 %v228
    %504 = vmatpush.msra.mxu0 %v226
    %505 = vmatpush.msra.mxu0 %v224
    %506 = vmatpush.msra.mxu0 %v222
    %507 = vmatpush.msra.mxu0 %v220
    %508 = vmatpush.msra.mxu0 %v218
    %509 = vmatpush.msra.mxu0 %v216
    %510 = vmatpush.msra.mxu0 %v214
    %511 = vmatpush.msra.mxu0 %v212
    %512 = vmatpush.msra.mxu0 %v210
    %513 = vmatpush.msra.mxu0 %v208
    %514 = vmatpush.msra.mxu0 %v206
    %515 = vmatpush.msra.mxu0 %v204
    %516 = vmatpush.msra.mxu0 %v202
    %517 = vmatmul.f32.gmra.mxu0 %v476
    %v518 = vpop.f32.mrf.mxu0
    %v519 = vadd.f32 %v499, %v518
    %520 = vdwg.mxu0
    %521 = vmatpush.msra.mxu0 %v264
    %522 = vmatpush.msra.mxu0 %v262
    %523 = vmatpush.msra.mxu0 %v260
    %524 = vmatpush.msra.mxu0 %v258
    %525 = vmatpush.msra.mxu0 %v256
    %526 = vmatpush.msra.mxu0 %v254
    %527 = vmatpush.msra.mxu0 %v252
    %528 = vmatpush.msra.mxu0 %v250
    %529 = vmatpush.msra.mxu0 %v248
    %530 = vmatpush.msra.mxu0 %v246
    %531 = vmatpush.msra.mxu0 %v244
    %532 = vmatpush.msra.mxu0 %v242
    %533 = vmatpush.msra.mxu0 %v240
    %534 = vmatpush.msra.mxu0 %v238
    %535 = vmatpush.msra.mxu0 %v236
    %536 = vmatpush.msra.mxu0 %v234
    %537 = vmatmul.f32.gmra.mxu0 %v477
    %v538 = vpop.f32.mrf.mxu0
    %v539 = vadd.f32 %v519, %v538
    %540 = vdwg.mxu0
    %541 = vmatpush.msra.mxu0 %v201
    %542 = vmatpush.msra.mxu0 %v199
    %543 = vmatpush.msra.mxu0 %v197
    %544 = vmatpush.msra.mxu0 %v195
    %545 = vmatpush.msra.mxu0 %v193
    %546 = vmatpush.msra.mxu0 %v191
    %547 = vmatpush.msra.mxu0 %v189
    %548 = vmatpush.msra.mxu0 %v187
    %549 = vmatpush.msra.mxu0 %v185
    %550 = vmatpush.msra.mxu0 %v183
    %551 = vmatpush.msra.mxu0 %v181
    %552 = vmatpush.msra.mxu0 %v179
    %553 = vmatpush.msra.mxu0 %v177
    %554 = vmatpush.msra.mxu0 %v175
    %555 = vmatpush.msra.mxu0 %v173
    %556 = vmatpush.msra.mxu0 %v171
    %557 = vmatmul.f32.gmra.mxu0 %v475
    %v558 = vpop.f32.mrf.mxu0
    %v559 = vadd.f32 0.0, %v558
    %560 = vdwg.mxu0
    %561 = vmatpush.msra.mxu0 %v233
    %562 = vmatpush.msra.mxu0 %v231
    %563 = vmatpush.msra.mxu0 %v229
    %564 = vmatpush.msra.mxu0 %v227
    %565 = vmatpush.msra.mxu0 %v225
    %566 = vmatpush.msra.mxu0 %v223
    %567 = vmatpush.msra.mxu0 %v221
    %568 = vmatpush.msra.mxu0 %v219
    %569 = vmatpush.msra.mxu0 %v217
    %570 = vmatpush.msra.mxu0 %v215
    %571 = vmatpush.msra.mxu0 %v213
    %572 = vmatpush.msra.mxu0 %v211
    %573 = vmatpush.msra.mxu0 %v209
    %574 = vmatpush.msra.mxu0 %v207
    %575 = vmatpush.msra.mxu0 %v205
    %576 = vmatpush.msra.mxu0 %v203
    %577 = vmatmul.f32.gmra.mxu0 %v476
    %v578 = vpop.f32.mrf.mxu0
    %v579 = vadd.f32 %v559, %v578
    %580 = vdwg.mxu0
    %581 = vmatpush.msra.mxu0 %v265
    %582 = vmatpush.msra.mxu0 %v263
    %583 = vmatpush.msra.mxu0 %v261
    %584 = vmatpush.msra.mxu0 %v259
    %585 = vmatpush.msra.mxu0 %v257
    %586 = vmatpush.msra.mxu0 %v255
    %587 = vmatpush.msra.mxu0 %v253
    %588 = vmatpush.msra.mxu0 %v251
    %589 = vmatpush.msra.mxu0 %v249
    %590 = vmatpush.msra.mxu0 %v247
    %591 = vmatpush.msra.mxu0 %v245
    %592 = vmatpush.msra.mxu0 %v243
    %593 = vmatpush.msra.mxu0 %v241
    %594 = vmatpush.msra.mxu0 %v239
    %595 = vmatpush.msra.mxu0 %v237
    %596 = vmatpush.msra.mxu0 %v235
    %597 = vmatmul.f32.gmra.mxu0 %v477
    %v598 = vpop.f32.mrf.mxu0
    %v599 = vadd.f32 %v579, %v598
    %600 = vdwg.mxu0
    %v603 = vrot.slane %v599, 7
    %v604 = vsel %vm276, %v539, %v603
    %v605 = vsel %vm282, %v539, %v603
    %v606 = vrot.slane %v605, 1
    %v607 = vsel %vm278, %v539, %v603
    %v608 = vrot.slane %v607, 2
    %v609 = vsel %vm284, %v539, %v603
    %v610 = vrot.slane %v609, 3
    %v611 = vsel %vm290, %v539, %v603
    %v612 = vrot.slane %v611, 4
    %v613 = vsel %vm455, %v539, %v603
    %v614 = vrot.slane %v613, 5
    %v621 = vmul.f32 %v446, %v604
    %v622 = vmul.f32 %v448, %v606
    %v623 = vmul.f32 %v450, %v608
    %v624 = vmul.f32 %v452, %v610
    %v625 = vmul.f32 %v454, %v612
    %v626 = vmul.f32 %v457, %v614
    %633 = vst [vmem:[#allocation1] ss:$9 sm:$0xff] %v621
    %s634 = scalar_lea.vmem [#allocation1], 1
    %635 = vst [vmem:[%s634] ss:$9 sm:$0xff] %v622
    %s636 = scalar_lea.vmem [#allocation1], 2
    %637 = vst [vmem:[%s636] ss:$9 sm:$0xff] %v623
    %v638 = vld [vmem:[#allocation1] sm:$0xff]
    %v639 = vld [vmem:[#allocation1 + $0x9] sm:$0xff]
    %640 = vst [vmem:[#allocation1] ss:$9 sm:$0xff] %v624
    %641 = vst [vmem:[%s634] ss:$9 sm:$0xff] %v625
    %642 = vst [vmem:[%s636] ss:$9 sm:$0xff] %v626
    %v643 = vld [vmem:[#allocation1] sm:$0xff]
    %v644 = vld [vmem:[#allocation1 + $0x9] sm:$0xff]
    %vm649 = vcmask 1042432
    %v650 = vsel %vm649, %v638, 0.0
    %v651 = vrot.slane %v650, 4
    %v652 = vadd.f32 %v650, %v651
    %v653 = vrot.slane %v652, 2
    %v654 = vadd.f32 %v652, %v653
    %v655 = vrot.slane %v654, 1
    %v656 = vadd.f32 %v654, %v655
    %v657 = vsel %vm649, %v639, 0.0
    %v658 = vrot.slane %v657, 4
    %v659 = vadd.f32 %v657, %v658
    %v660 = vrot.slane %v659, 2
    %v661 = vadd.f32 %v659, %v660
    %v662 = vrot.slane %v661, 1
    %v663 = vadd.f32 %v661, %v662
    %v664 = vsel %vm649, %v643, 0.0
    %v665 = vrot.slane %v664, 4
    %v666 = vadd.f32 %v664, %v665
    %v667 = vrot.slane %v666, 2
    %v668 = vadd.f32 %v666, %v667
    %v669 = vrot.slane %v668, 1
    %v670 = vadd.f32 %v668, %v669
    %v671 = vsel %vm649, %v644, 0.0
    %v672 = vrot.slane %v671, 4
    %v673 = vadd.f32 %v671, %v672
    %v674 = vrot.slane %v673, 2
    %v675 = vadd.f32 %v673, %v674
    %v676 = vrot.slane %v675, 1
    %v677 = vadd.f32 %v675, %v676
    %v678 = vmul.f32 %v604, %v604
    %v679 = vmul.f32 %v606, %v606
    %v680 = vmul.f32 %v608, %v608
    %v681 = vmul.f32 %v610, %v610
    %v682 = vmul.f32 %v612, %v612
    %v683 = vmul.f32 %v614, %v614
    %690 = vst [vmem:[#allocation1] ss:$9 sm:$0xff] %v678
    %s691 = scalar_lea.vmem [#allocation1], 1
    %692 = vst [vmem:[%s691] ss:$9 sm:$0xff] %v679
    %s693 = scalar_lea.vmem [#allocation1], 2
    %694 = vst [vmem:[%s693] ss:$9 sm:$0xff] %v680
    %v695 = vld [vmem:[#allocation1] sm:$0xff]
    %v696 = vld [vmem:[#allocation1 + $0x9] sm:$0xff]
    %697 = vst [vmem:[#allocation1] ss:$9 sm:$0xff] %v681
    %698 = vst [vmem:[%s691] ss:$9 sm:$0xff] %v682
    %699 = vst [vmem:[%s693] ss:$9 sm:$0xff] %v683
    %v700 = vld [vmem:[#allocation1] sm:$0xff]
    %v701 = vld [vmem:[#allocation1 + $0x9] sm:$0xff]
    %v706 = vsel %vm649, %v695, 0.0
    %v707 = vrot.slane %v706, 4
    %v708 = vadd.f32 %v706, %v707
    %v709 = vrot.slane %v708, 2
    %v710 = vadd.f32 %v708, %v709
    %v711 = vrot.slane %v710, 1
    %v712 = vadd.f32 %v710, %v711
    %v713 = vsel %vm649, %v696, 0.0
    %v714 = vrot.slane %v713, 4
    %v715 = vadd.f32 %v713, %v714
    %v716 = vrot.slane %v715, 2
    %v717 = vadd.f32 %v715, %v716
    %v718 = vrot.slane %v717, 1
    %v719 = vadd.f32 %v717, %v718
    %v720 = vsel %vm649, %v700, 0.0
    %v721 = vrot.slane %v720, 4
    %v722 = vadd.f32 %v720, %v721
    %v723 = vrot.slane %v722, 2
    %v724 = vadd.f32 %v722, %v723
    %v725 = vrot.slane %v724, 1
    %v726 = vadd.f32 %v724, %v725
    %v727 = vsel %vm649, %v701, 0.0
    %v728 = vrot.slane %v727, 4
    %v729 = vadd.f32 %v727, %v728
    %v730 = vrot.slane %v729, 2
    %v731 = vadd.f32 %v729, %v730
    %v732 = vrot.slane %v731, 1
    %v733 = vadd.f32 %v731, %v732
    %v734 = vadd.f32 %v712, 1e-06
    %v735 = vadd.f32 %v719, 1e-06
    %v736 = vadd.f32 %v726, 1e-06
    %v737 = vadd.f32 %v733, 1e-06
    %v738 = vrcp.pop %v734
    %v739 = vrcp.pop %v735
    %v740 = vrcp.pop %v736
    %v741 = vrcp.pop %v737
    %vm742 = vcmp.lt.f32.partialorder %v656, 0.0
    %vm743 = vcmp.lt.f32.partialorder %v663, 0.0
    %vm744 = vcmp.lt.f32.partialorder %v670, 0.0
    %vm745 = vcmp.lt.f32.partialorder %v677, 0.0
    %v746 = vmul.f32 %v656, %v738
    %v747 = vmul.f32 %v663, %v739
    %v748 = vmul.f32 %v670, %v740
    %v749 = vmul.f32 %v677, %v741
    %v750 = vsel %vm742, %v746, 0.0
    %v751 = vsel %vm743, %v747, 0.0
    %v752 = vsel %vm744, %v748, 0.0
    %v753 = vsel %vm745, %v749, 0.0
    %v754 = vmul.f32 %v750, 0.8
    %v755 = vmul.f32 %v751, 0.8
    %v756 = vmul.f32 %v752, 0.8
    %v757 = vmul.f32 %v753, 0.8
    %758 = vst [vmem:[#allocation1] ss:$9 sm:$0xff] %v604
    %s759 = scalar_lea.vmem [#allocation1], 1
    %760 = vst [vmem:[%s759] ss:$9 sm:$0xff] %v606
    %s761 = scalar_lea.vmem [#allocation1], 2
    %762 = vst [vmem:[%s761] ss:$9 sm:$0xff] %v608
    %v763 = vld [vmem:[#allocation1] sm:$0xff]
    %v764 = vld [vmem:[#allocation1 + $0x9] sm:$0xff]
    %765 = vst [vmem:[#allocation1] ss:$9 sm:$0xff] %v610
    %766 = vst [vmem:[%s759] ss:$9 sm:$0xff] %v612
    %767 = vst [vmem:[%s761] ss:$9 sm:$0xff] %v614
    %v768 = vld [vmem:[#allocation1] sm:$0xff]
    %v769 = vld [vmem:[#allocation1 + $0x9] sm:$0xff]
    %v774 = vmul.f32 %v754, %v763
    %v775 = vmul.f32 %v755, %v764
    %v776 = vmul.f32 %v756, %v768
    %v777 = vmul.f32 %v757, %v769
    %v782 = vrot.slane %v775, 7
    %v783 = vrot.slane %v777, 7
    %v784 = vsel %vm276, %v774, %v782
    %v785 = vsel %vm282, %v774, %v782
    %v786 = vrot.slane %v785, 1
    %v787 = vsel %vm278, %v774, %v782
    %v788 = vrot.slane %v787, 2
    %v789 = vsel %vm276, %v776, %v783
    %v790 = vsel %vm282, %v776, %v783
    %v791 = vrot.slane %v790, 1
    %v792 = vsel %vm278, %v776, %v783
    %v793 = vrot.slane %v792, 2
    %v800 = vsub.f32 %v446, %v784
    %v801 = vsub.f32 %v448, %v786
    %v802 = vsub.f32 %v450, %v788
    %v803 = vsub.f32 %v452, %v789
    %v804 = vsub.f32 %v454, %v791
    %v805 = vsub.f32 %v457, %v793
    %v806 = vld [vmem:[%s3] sm:$0xff]
    %v807 = vld [vmem:[%s3 + $0x8] sm:$0xff]
    %v808 = vld [vmem:[%s3 + $0x10] sm:$0xff]
    %v809 = vld [vmem:[%s3 + $0x18] sm:$0xff]
    %v810 = vld [vmem:[%s3 + $0x20] sm:$0xff]
    %v811 = vld [vmem:[%s3 + $0x28] sm:$0xff]
    %v812 = vld [vmem:[%s3 + $0x30] sm:$0xff]
    %v813 = vld [vmem:[%s3 + $0x38] sm:$0xff]
    %v814 = vld [vmem:[%s3 + $0x40] sm:$0xff]
    %v815 = vld [vmem:[%s3 + $0x48] sm:$0xff]
    %v816 = vld [vmem:[%s3 + $0x50] sm:$0xff]
    %v817 = vld [vmem:[%s3 + $0x58] sm:$0xff]
    %v818 = vld [vmem:[%s3 + $0x60] sm:$0xff]
    %v819 = vld [vmem:[%s3 + $0x68] sm:$0xff]
    %v820 = vld [vmem:[%s3 + $0x70] sm:$0xff]
    %v821 = vld [vmem:[%s3 + $0x78] sm:$0xff]
    %v822 = vld [vmem:[%s3 + $0x80] sm:$0xff]
    %v823 = vld [vmem:[%s3 + $0x88] sm:$0xff]
    %v824 = vld [vmem:[%s3 + $0x90] sm:$0xff]
    %v825 = vld [vmem:[%s3 + $0x98] sm:$0xff]
    %v826 = vld [vmem:[%s3 + $0xa0] sm:$0xff]
    %v827 = vld [vmem:[%s3 + $0xa8] sm:$0xff]
    %v828 = vld [vmem:[%s3 + $0xb0] sm:$0xff]
    %v829 = vld [vmem:[%s3 + $0xb8] sm:$0xff]
    %v830 = vld [vmem:[%s3 + $0xc0] sm:$0xff]
    %v831 = vld [vmem:[%s3 + $0xc8] sm:$0xff]
    %v832 = vld [vmem:[%s3 + $0xd0] sm:$0xff]
    %v833 = vld [vmem:[%s3 + $0xd8] sm:$0xff]
    %v834 = vld [vmem:[%s3 + $0xe0] sm:$0xff]
    %v835 = vld [vmem:[%s3 + $0xe8] sm:$0xff]
    %v836 = vld [vmem:[%s3 + $0xf0] sm:$0xff]
    %v837 = vld [vmem:[%s3 + $0xf8] sm:$0xff]
    %v838 = vld [vmem:[#allocation6] sm:$0xff]
    %v839 = vld [vmem:[#allocation6 + $0x8] sm:$0xff]
    %v840 = vld [vmem:[#allocation6 + $0x10] sm:$0xff]
    %v841 = vld [vmem:[#allocation6 + $0x18] sm:$0xff]
    %v842 = vld [vmem:[#allocation6 + $0x20] sm:$0xff]
    %v843 = vld [vmem:[#allocation6 + $0x28] sm:$0xff]
    %v844 = vld [vmem:[#allocation6 + $0x30] sm:$0xff]
    %v845 = vld [vmem:[#allocation6 + $0x38] sm:$0xff]
    %v846 = vld [vmem:[#allocation6 + $0x40] sm:$0xff]
    %v847 = vld [vmem:[#allocation6 + $0x48] sm:$0xff]
    %v848 = vld [vmem:[#allocation6 + $0x50] sm:$0xff]
    %v849 = vld [vmem:[#allocation6 + $0x58] sm:$0xff]
    %v850 = vld [vmem:[#allocation6 + $0x60] sm:$0xff]
    %v851 = vld [vmem:[#allocation6 + $0x68] sm:$0xff]
    %v852 = vld [vmem:[#allocation6 + $0x70] sm:$0xff]
    %v853 = vld [vmem:[#allocation6 + $0x78] sm:$0xff]
    %v854 = vld [vmem:[#allocation6 + $0x80] sm:$0xff]
    %v855 = vld [vmem:[#allocation6 + $0x88] sm:$0xff]
    %v856 = vld [vmem:[#allocation6 + $0x90] sm:$0xff]
    %v857 = vld [vmem:[#allocation6 + $0x98] sm:$0xff]
    %v858 = vld [vmem:[#allocation6 + $0xa0] sm:$0xff]
    %v859 = vld [vmem:[#allocation6 + $0xa8] sm:$0xff]
    %v860 = vld [vmem:[#allocation6 + $0xb0] sm:$0xff]
    %v861 = vld [vmem:[#allocation6 + $0xb8] sm:$0xff]
    %v862 = vld [vmem:[#allocation6 + $0xc0] sm:$0xff]
    %v863 = vld [vmem:[#allocation6 + $0xc8] sm:$0xff]
    %v864 = vld [vmem:[#allocation6 + $0xd0] sm:$0xff]
    %v865 = vld [vmem:[#allocation6 + $0xd8] sm:$0xff]
    %v866 = vld [vmem:[#allocation6 + $0xe0] sm:$0xff]
    %v867 = vld [vmem:[#allocation6 + $0xe8] sm:$0xff]
    %v868 = vld [vmem:[#allocation6 + $0xf0] sm:$0xff]
    %v869 = vld [vmem:[#allocation6 + $0xf8] sm:$0xff]
    %876 = vst [vmem:[#allocation1] ss:$9 sm:$0xff] %v800
    %s877 = scalar_lea.vmem [#allocation1], 1
    %878 = vst [vmem:[%s877] ss:$9 sm:$0xff] %v801
    %s879 = scalar_lea.vmem [#allocation1], 2
    %880 = vst [vmem:[%s879] ss:$9 sm:$0xff] %v802
    %s881 = scalar_lea.vmem [#allocation1], 3
    %882 = vst [vmem:[%s881] ss:$9 sm:$0xff] %v803
    %s883 = scalar_lea.vmem [#allocation1], 4
    %884 = vst [vmem:[%s883] ss:$9 sm:$0xff] %v804
    %s885 = scalar_lea.vmem [#allocation1], 5
    %886 = vst [vmem:[%s885] ss:$9 sm:$0xff] %v805
    %v887 = vld [vmem:[#allocation1] sm:$0xff]
    %v888 = vld [vmem:[#allocation1 + $0x9] sm:$0xff]
    %891 = vmatpush.msra.mxu0 %v821
    %892 = vmatpush.msra.mxu0 %v820
    %893 = vmatpush.msra.mxu0 %v819
    %894 = vmatpush.msra.mxu0 %v818
    %895 = vmatpush.msra.mxu0 %v817
    %896 = vmatpush.msra.mxu0 %v816
    %897 = vmatpush.msra.mxu0 %v815
    %898 = vmatpush.msra.mxu0 %v814
    %899 = vmatpush.msra.mxu0 %v813
    %900 = vmatpush.msra.mxu0 %v812
    %901 = vmatpush.msra.mxu0 %v811
    %902 = vmatpush.msra.mxu0 %v810
    %903 = vmatpush.msra.mxu0 %v809
    %904 = vmatpush.msra.mxu0 %v808
    %905 = vmatpush.msra.mxu0 %v807
    %906 = vmatpush.msra.mxu0 %v806
    %907 = vmatmul.f32.gmra.mxu0 %v887
    %v908 = vpop.f32.mrf.mxu0
    %v909 = vadd.f32 0.0, %v908
    %910 = vdwg.mxu0
    %911 = vmatpush.msra.mxu0 %v837
    %912 = vmatpush.msra.mxu0 %v836
    %913 = vmatpush.msra.mxu0 %v835
    %914 = vmatpush.msra.mxu0 %v834
    %915 = vmatpush.msra.mxu0 %v833
    %916 = vmatpush.msra.mxu0 %v832
    %917 = vmatpush.msra.mxu0 %v831
    %918 = vmatpush.msra.mxu0 %v830
    %919 = vmatpush.msra.mxu0 %v829
    %920 = vmatpush.msra.mxu0 %v828
    %921 = vmatpush.msra.mxu0 %v827
    %922 = vmatpush.msra.mxu0 %v826
    %923 = vmatpush.msra.mxu0 %v825
    %924 = vmatpush.msra.mxu0 %v824
    %925 = vmatpush.msra.mxu0 %v823
    %926 = vmatpush.msra.mxu0 %v822
    %927 = vmatmul.f32.gmra.mxu0 %v888
    %v928 = vpop.f32.mrf.mxu0
    %v929 = vadd.f32 %v909, %v928
    %930 = vdwg.mxu0
    %v932 = vrot.slane %v929, 1
    %v933 = vrot.slane %v929, 2
    %v934 = vrot.slane %v929, 3
    %v935 = vrot.slane %v929, 4
    %v936 = vrot.slane %v929, 5
    %942 = vst [vmem:[#allocation1] ss:$9 sm:$0xff] %v800
    %s943 = scalar_lea.vmem [#allocation1], 1
    %944 = vst [vmem:[%s943] ss:$9 sm:$0xff] %v801
    %s945 = scalar_lea.vmem [#allocation1], 2
    %946 = vst [vmem:[%s945] ss:$9 sm:$0xff] %v802
    %s947 = scalar_lea.vmem [#allocation1], 3
    %948 = vst [vmem:[%s947] ss:$9 sm:$0xff] %v803
    %s949 = scalar_lea.vmem [#allocation1], 4
    %950 = vst [vmem:[%s949] ss:$9 sm:$0xff] %v804
    %s951 = scalar_lea.vmem [#allocation1], 5
    %952 = vst [vmem:[%s951] ss:$9 sm:$0xff] %v805
    %v953 = vld [vmem:[#allocation1] sm:$0xff]
    %v954 = vld [vmem:[#allocation1 + $0x9] sm:$0xff]
    %957 = vmatpush.msra.mxu0 %v853
    %958 = vmatpush.msra.mxu0 %v852
    %959 = vmatpush.msra.mxu0 %v851
    %960 = vmatpush.msra.mxu0 %v850
    %961 = vmatpush.msra.mxu0 %v849
    %962 = vmatpush.msra.mxu0 %v848
    %963 = vmatpush.msra.mxu0 %v847
    %964 = vmatpush.msra.mxu0 %v846
    %965 = vmatpush.msra.mxu0 %v845
    %966 = vmatpush.msra.mxu0 %v844
    %967 = vmatpush.msra.mxu0 %v843
    %968 = vmatpush.msra.mxu0 %v842
    %969 = vmatpush.msra.mxu0 %v841
    %970 = vmatpush.msra.mxu0 %v840
    %971 = vmatpush.msra.mxu0 %v839
    %972 = vmatpush.msra.mxu0 %v838
    %973 = vmatmul.f32.gmra.mxu0 %v953
    %v974 = vpop.f32.mrf.mxu0
    %v975 = vadd.f32 0.0, %v974
    %976 = vdwg.mxu0
    %977 = vmatpush.msra.mxu0 %v869
    %978 = vmatpush.msra.mxu0 %v868
    %979 = vmatpush.msra.mxu0 %v867
    %980 = vmatpush.msra.mxu0 %v866
    %981 = vmatpush.msra.mxu0 %v865
    %982 = vmatpush.msra.mxu0 %v864
    %983 = vmatpush.msra.mxu0 %v863
    %984 = vmatpush.msra.mxu0 %v862
    %985 = vmatpush.msra.mxu0 %v861
    %986 = vmatpush.msra.mxu0 %v860
    %987 = vmatpush.msra.mxu0 %v859
    %988 = vmatpush.msra.mxu0 %v858
    %989 = vmatpush.msra.mxu0 %v857
    %990 = vmatpush.msra.mxu0 %v856
    %991 = vmatpush.msra.mxu0 %v855
    %992 = vmatpush.msra.mxu0 %v854
    %993 = vmatmul.f32.gmra.mxu0 %v954
    %v994 = vpop.f32.mrf.mxu0
    %v995 = vadd.f32 %v975, %v994
    %996 = vdwg.mxu0
    %v998 = vrot.slane %v995, 1
    %v999 = vrot.slane %v995, 2
    %v1000 = vrot.slane %v995, 3
    %v1001 = vrot.slane %v995, 4
    %v1002 = vrot.slane %v995, 5
    %v1008 = vmul.f32 %v929, %v995
    %v1009 = vmul.f32 %v932, %v998
    %v1010 = vmul.f32 %v933, %v999
    %v1011 = vmul.f32 %v934, %v1000
    %v1012 = vmul.f32 %v935, %v1001
    %v1013 = vmul.f32 %v936, %v1002
    %1020 = vst [vmem:[#allocation1] ss:$9 sm:$0xff] %v1008
    %s1021 = scalar_lea.vmem [#allocation1], 1
    %1022 = vst [vmem:[%s1021] ss:$9 sm:$0xff] %v1009
    %s1023 = scalar_lea.vmem [#allocation1], 2
    %1024 = vst [vmem:[%s1023] ss:$9 sm:$0xff] %v1010
    %v1025 = vld [vmem:[#allocation1] sm:$0xff]
    %1026 = vst [vmem:[#allocation1] ss:$9 sm:$0xff] %v1011
    %1027 = vst [vmem:[%s1021] ss:$9 sm:$0xff] %v1012
    %1028 = vst [vmem:[%s1023] ss:$9 sm:$0xff] %v1013
    %v1029 = vld [vmem:[#allocation1] sm:$0xff]
    %v1032 = vsel %vm649, %v1025, 0.0
    %v1033 = vrot.slane %v1032, 4
    %v1034 = vadd.f32 %v1032, %v1033
    %v1035 = vrot.slane %v1034, 2
    %v1036 = vadd.f32 %v1034, %v1035
    %v1037 = vrot.slane %v1036, 1
    %v1038 = vadd.f32 %v1036, %v1037
    %v1039 = vsel %vm649, %v1029, 0.0
    %v1040 = vrot.slane %v1039, 4
    %v1041 = vadd.f32 %v1039, %v1040
    %v1042 = vrot.slane %v1041, 2
    %v1043 = vadd.f32 %v1041, %v1042
    %v1044 = vrot.slane %v1043, 1
    %v1045 = vadd.f32 %v1043, %v1044
    %v1046 = vmul.f32 %v995, %v995
    %v1047 = vmul.f32 %v998, %v998
    %v1048 = vmul.f32 %v999, %v999
    %v1049 = vmul.f32 %v1000, %v1000
    %v1050 = vmul.f32 %v1001, %v1001
    %v1051 = vmul.f32 %v1002, %v1002
    %1058 = vst [vmem:[#allocation1] ss:$9 sm:$0xff] %v1046
    %s1059 = scalar_lea.vmem [#allocation1], 1
    %1060 = vst [vmem:[%s1059] ss:$9 sm:$0xff] %v1047
    %s1061 = scalar_lea.vmem [#allocation1], 2
    %1062 = vst [vmem:[%s1061] ss:$9 sm:$0xff] %v1048
    %v1063 = vld [vmem:[#allocation1] sm:$0xff]
    %1064 = vst [vmem:[#allocation1] ss:$9 sm:$0xff] %v1049
    %1065 = vst [vmem:[%s1059] ss:$9 sm:$0xff] %v1050
    %1066 = vst [vmem:[%s1061] ss:$9 sm:$0xff] %v1051
    %v1067 = vld [vmem:[#allocation1] sm:$0xff]
    %v1070 = vsel %vm649, %v1063, 0.0
    %v1071 = vrot.slane %v1070, 4
    %v1072 = vadd.f32 %v1070, %v1071
    %v1073 = vrot.slane %v1072, 2
    %v1074 = vadd.f32 %v1072, %v1073
    %v1075 = vrot.slane %v1074, 1
    %v1076 = vadd.f32 %v1074, %v1075
    %v1077 = vsel %vm649, %v1067, 0.0
    %v1078 = vrot.slane %v1077, 4
    %v1079 = vadd.f32 %v1077, %v1078
    %v1080 = vrot.slane %v1079, 2
    %v1081 = vadd.f32 %v1079, %v1080
    %v1082 = vrot.slane %v1081, 1
    %v1083 = vadd.f32 %v1081, %v1082
    %v1084 = vadd.f32 %v1076, 1e-06
    %v1085 = vadd.f32 %v1083, 1e-06
    %v1086 = vrcp.pop %v1084
    %v1087 = vrcp.pop %v1085
    %vm1088 = vcmp.lt.f32.partialorder %v1038, 0.0
    %vm1089 = vcmp.lt.f32.partialorder %v1045, 0.0
    %v1090 = vmul.f32 %v1038, %v1086
    %v1091 = vmul.f32 %v1045, %v1087
    %v1092 = vsel %vm1088, %v1090, 0.0
    %v1093 = vsel %vm1089, %v1091, 0.0
    %v1094 = vmul.f32 %v1092, 0.8
    %v1095 = vmul.f32 %v1093, 0.8
    %1096 = vst [vmem:[#allocation1] ss:$9 sm:$0xff] %v995
    %s1097 = scalar_lea.vmem [#allocation1], 1
    %1098 = vst [vmem:[%s1097] ss:$9 sm:$0xff] %v998
    %s1099 = scalar_lea.vmem [#allocation1], 2
    %1100 = vst [vmem:[%s1099] ss:$9 sm:$0xff] %v999
    %v1101 = vld [vmem:[#allocation1] sm:$0xff]
    %1102 = vst [vmem:[#allocation1] ss:$9 sm:$0xff] %v1000
    %1103 = vst [vmem:[%s1097] ss:$9 sm:$0xff] %v1001
    %1104 = vst [vmem:[%s1099] ss:$9 sm:$0xff] %v1002
    %v1105 = vld [vmem:[#allocation1] sm:$0xff]
    %v1108 = vmul.f32 %v1094, %v1101
    %v1109 = vmul.f32 %v1095, %v1105
    %v1112 = vrot.slane %v1108, 1
    %v1113 = vrot.slane %v1108, 2
    %v1114 = vrot.slane %v1109, 1
    %v1115 = vrot.slane %v1109, 2
    %v1120 = vsub.f32 %v929, %v1108
    %v1121 = vsub.f32 %v932, %v1112
    %v1122 = vsub.f32 %v933, %v1113
    %v1123 = vsub.f32 %v934, %v1109
    %v1124 = vsub.f32 %v935, %v1114
    %v1125 = vsub.f32 %v936, %v1115
    %v1126 = vld [vmem:[%s5] sm:$0xff]
    %v1127 = vld [vmem:[%s5 + $0x8] sm:$0xff]
    %v1128 = vld [vmem:[%s5 + $0x10] sm:$0xff]
    %v1129 = vld [vmem:[%s5 + $0x18] sm:$0xff]
    %v1130 = vld [vmem:[%s5 + $0x20] sm:$0xff]
    %v1131 = vld [vmem:[%s5 + $0x28] sm:$0xff]
    %v1132 = vld [vmem:[%s5 + $0x30] sm:$0xff]
    %v1133 = vld [vmem:[%s5 + $0x38] sm:$0xff]
    %v1134 = vld [vmem:[%s5 + $0x40] sm:$0xff]
    %v1135 = vld [vmem:[%s5 + $0x48] sm:$0xff]
    %v1136 = vld [vmem:[%s5 + $0x50] sm:$0xff]
    %v1137 = vld [vmem:[%s5 + $0x58] sm:$0xff]
    %v1138 = vld [vmem:[%s5 + $0x60] sm:$0xff]
    %v1139 = vld [vmem:[%s5 + $0x68] sm:$0xff]
    %v1140 = vld [vmem:[%s5 + $0x70] sm:$0xff]
    %v1141 = vld [vmem:[%s5 + $0x78] sm:$0xff]
    %1148 = vst [vmem:[#allocation1] ss:$9 sm:$0xff] %v1120
    %s1149 = scalar_lea.vmem [#allocation1], 1
    %1150 = vst [vmem:[%s1149] ss:$9 sm:$0xff] %v1121
    %s1151 = scalar_lea.vmem [#allocation1], 2
    %1152 = vst [vmem:[%s1151] ss:$9 sm:$0xff] %v1122
    %s1153 = scalar_lea.vmem [#allocation1], 3
    %1154 = vst [vmem:[%s1153] ss:$9 sm:$0xff] %v1123
    %s1155 = scalar_lea.vmem [#allocation1], 4
    %1156 = vst [vmem:[%s1155] ss:$9 sm:$0xff] %v1124
    %s1157 = scalar_lea.vmem [#allocation1], 5
    %1158 = vst [vmem:[%s1157] ss:$9 sm:$0xff] %v1125
    %v1159 = vld [vmem:[#allocation1] sm:$0xff]
    %1161 = vmatpush.msra.mxu0 %v1141
    %1162 = vmatpush.msra.mxu0 %v1140
    %1163 = vmatpush.msra.mxu0 %v1139
    %1164 = vmatpush.msra.mxu0 %v1138
    %1165 = vmatpush.msra.mxu0 %v1137
    %1166 = vmatpush.msra.mxu0 %v1136
    %1167 = vmatpush.msra.mxu0 %v1135
    %1168 = vmatpush.msra.mxu0 %v1134
    %1169 = vmatpush.msra.mxu0 %v1133
    %1170 = vmatpush.msra.mxu0 %v1132
    %1171 = vmatpush.msra.mxu0 %v1131
    %1172 = vmatpush.msra.mxu0 %v1130
    %1173 = vmatpush.msra.mxu0 %v1129
    %1174 = vmatpush.msra.mxu0 %v1128
    %1175 = vmatpush.msra.mxu0 %v1127
    %1176 = vmatpush.msra.mxu0 %v1126
    %1177 = vmatmul.f32.gmra.mxu0 %v1159
    %v1178 = vpop.f32.mrf.mxu0
    %v1179 = vadd.f32 0.0, %v1178
    %1180 = vdwg.mxu0
    %v1182 = vrot.slane %v1179, 1
    %v1183 = vrot.slane %v1179, 2
    %v1184 = vrot.slane %v1179, 3
    %v1185 = vrot.slane %v1179, 4
    %v1186 = vrot.slane %v1179, 5
    %1187 = vst [vmem:[#allocation1] ss:$9 sm:$0xff] %v1179
    %s1188 = scalar_lea.vmem [#allocation1], 1
    %1189 = vst [vmem:[%s1188] ss:$9 sm:$0xff] %v1182
    %s1190 = scalar_lea.vmem [#allocation1], 2
    %1191 = vst [vmem:[%s1190] ss:$9 sm:$0xff] %v1183
    %v1192 = vld [vmem:[#allocation1] sm:$0xff]
    %1193 = vst [vmem:[#allocation1] ss:$9 sm:$0xff] %v1184
    %1194 = vst [vmem:[%s1188] ss:$9 sm:$0xff] %v1185
    %1195 = vst [vmem:[%s1190] ss:$9 sm:$0xff] %v1186
    %v1196 = vld [vmem:[#allocation1] sm:$0xff]
    %vm1199 = vcmask 518144
    %1200 = vst.msk [vmem:[%s6] sm:$0x7] %vm1199, %v1192
    %1201 = vst.msk [vmem:[%s6 + $0x4] sm:$0x7] %vm1199, %v1196
    // Predicated region
    $region38: #{evstnkd_forward.3} parent=1 // pred_check
      _
    $region39: #{evstnkd_forward.3} parent=1 // pred_check_branch
      %1203 = sbr.rel (0) target = $region41
    $region40: #{evstnkd_forward.3} parent=1 // pred_region
      _
    $region41: #{evstnkd_forward.3} parent=1 // pred_fallthru
      _
    // Predicated region
    $region42: #{evstnkd_forward.3} parent=1 // pred_check
      _
    $region43: #{evstnkd_forward.3} parent=1 // pred_check_branch
      %1205 = sbr.rel (0) target = $region45
    $region44: #{evstnkd_forward.3} parent=1 // pred_region
      _
    $region45: #{evstnkd_forward.3} parent=1 // pred_fallthru
      _
    %1206 = vsyncpa [#allocation3], 1
    %1207 = vsyncpa [#allocation5], 1

</llo_original>
